<compile_context>
chip_gen: v5e
topology: v5e:2x2
jax: 0.10.0
libtpu: 0.0.40
codegen_flags: <defaults>
</compile_context>

<pallas_src>
import functools

import jax
import jax.numpy as jnp
from jax.experimental import pallas as pl
from jax.experimental.pallas import tpu as pltpu

_LANE = 128
_SUBLANE = 8


def _round_up(n, m):
    return ((n + m - 1) // m) * m


def _vae_forward_kernel(n_enc_hidden, n_dec, *refs):
    """Fused VAE forward on one batch tile.

    refs layout (all shapes padded / lane-dense):
      refs[0]                      x_ref     (TB, IN_PAD)   f32
      refs[1]                      eps_ref   (TB, L_PAD)    f32 (zero in padded lanes)
      next 2*n_enc_hidden          encoder trunk (W bf16, b f32) pairs
      next 4                       W_mu, b_mu, W_ls, b_ls  (split encoder head)
      next 2*n_dec                 decoder (W bf16, b f32) pairs
      refs[-1]                     out_ref   (TB, IN_PAD)   f32
    """
    x_ref = refs[0]
    eps_ref = refs[1]
    idx = 2
    enc_hidden = refs[idx: idx + 2 * n_enc_hidden]
    idx += 2 * n_enc_hidden
    w_mu_ref, b_mu_ref, w_ls_ref, b_ls_ref = refs[idx: idx + 4]
    idx += 4
    dec_refs = refs[idx: idx + 2 * n_dec]
    idx += 2 * n_dec
    out_ref = refs[idx]

    def linear(h, w_ref, b_ref, relu):
        # bf16 operands on the MXU, f32 accumulation; bias/ReLU stay in f32 (VPU).
        y = jnp.dot(h.astype(w_ref.dtype), w_ref[...],
                    preferred_element_type=jnp.float32) + b_ref[...]
        return jnp.maximum(y, 0.0) if relu else y

    # ----- encoder trunk: Linear + ReLU -----
    h = x_ref[...]
    for li in range(n_enc_hidden):
        h = linear(h, enc_hidden[2 * li], enc_hidden[2 * li + 1], relu=True)

    # ----- encoder heads (no activation; split wrapper-side -> no lane slice) -----
    mu_z = linear(h, w_mu_ref, b_mu_ref, relu=False)
    log_sigma_z = linear(h, w_ls_ref, b_ls_ref, relu=False)

    # ----- reparameterization (f32; padded lanes: eps == 0 -> z == 0) -----
    z = mu_z + jnp.exp(log_sigma_z) * eps_ref[...]

    # ----- decoder: Linear + ReLU between layers, none at the end -----
    h = z
    for li in range(n_dec):
        h = linear(h, dec_refs[2 * li], dec_refs[2 * li + 1],
                   relu=(li != n_dec - 1))

    out_ref[...] = h.astype(out_ref.dtype)


def vae_linear_forward(x, eps, enc_params, dec_params, latent_s,
                       *, block_b=128, mxu_dtype=jnp.bfloat16):
    """Pads/flattens parameters and invokes the fused, batch-gridded kernel.

    x:   (B, in_size) f32
    eps: (B, latent_s) f32 standard-normal noise (torch.randn equivalent)
    enc_params/dec_params: lists of (W, b) with W shaped (fan_in, fan_out)
                           (i.e. the PyTorch nn.Linear weight transposed).
    """
    B, in_size = x.shape
    assert eps.shape == (B, latent_s)
    n_enc = len(enc_params)
    n_dec = len(dec_params)
    n_enc_hidden = n_enc - 1

    def pad_cols(n):
        return _round_up(max(int(n), 1), _LANE)

    in_pad = pad_cols(in_size)
    lat_pad = pad_cols(latent_s)

    # Batch tile: multiple of 8 sublanes (f32), capped at block_b.
    tb = min(block_b, _round_up(B, _SUBLANE))
    b_pad = _round_up(B, tb)

    def pad_mat(w, rows, cols, dtype):
        out = jnp.zeros((rows, cols), dtype)
        return out.at[: w.shape[0], : w.shape[1]].set(w.astype(dtype))

    def pad_bias(b, cols):
        out = jnp.zeros((1, cols), jnp.float32)
        return out.at[0, : b.shape[0]].set(b.astype(jnp.float32))

    flat_params = []
    # Encoder trunk (all but last layer): weights bf16, biases f32.
    h_dim = in_pad
    for (w, b) in enc_params[:-1]:
        fo = pad_cols(w.shape[1])
        flat_params.append(pad_mat(w, h_dim, fo, mxu_dtype))
        flat_params.append(pad_bias(b, fo))
        h_dim = fo
    # Encoder head split: columns [:latent_s] -> mu, [latent_s:] -> log_sigma.
    w_last, b_last = enc_params[-1]
    flat_params.append(pad_mat(w_last[:, :latent_s], h_dim, lat_pad, mxu_dtype))
    flat_params.append(pad_bias(b_last[:latent_s], lat_pad))
    flat_params.append(pad_mat(w_last[:, latent_s:], h_dim, lat_pad, mxu_dtype))
    flat_params.append(pad_bias(b_last[latent_s:], lat_pad))
    # Decoder.
    h_dim = lat_pad
    for (w, b) in dec_params:
        fo = pad_cols(w.shape[1])
        flat_params.append(pad_mat(w, h_dim, fo, mxu_dtype))
        flat_params.append(pad_bias(b, fo))
        h_dim = fo
    out_pad = h_dim  # padded in_size

    # Lane-dense, zero-padded activations (zero eps padding keeps padded z == 0).
    x_p = jnp.zeros((b_pad, in_pad), jnp.float32).at[:B, :in_size].set(
        x.astype(jnp.float32))
    eps_p = jnp.zeros((b_pad, lat_pad), jnp.float32).at[:B, :latent_s].set(
        eps.astype(jnp.float32))

    grid = (b_pad // tb,)

    # Batch-tiled activation specs; weights/biases VMEM-resident (fixed block idx).
    x_spec = pl.BlockSpec((tb, in_pad), lambda i: (i, 0))
    eps_spec = pl.BlockSpec((tb, lat_pad), lambda i: (i, 0))
    out_spec = pl.BlockSpec((tb, out_pad), lambda i: (i, 0))
    w_specs = [pl.BlockSpec(p.shape, lambda i: (0, 0)) for p in flat_params]

    # VMEM budget: resident params + double-buffered activation tiles + headroom.
    param_bytes = sum(int(p.size) * int(p.dtype.itemsize) for p in flat_params)
    act_bytes = 2 * (tb * in_pad + tb * lat_pad + tb * out_pad) * 4
    widest = max(int(p.shape[1]) for p in flat_params)
    scratch_bytes = 4 * tb * widest * 4
    vmem_limit = min(int(1.5 * (param_bytes + act_bytes + scratch_bytes)) + (4 << 20),
                     96 << 20)
    vmem_limit = max(vmem_limit, 16 << 20)

    # Cost estimate (advisory, improves XLA scheduling around the custom call).
    flops = 2 * b_pad * sum(int(p.shape[0]) * int(p.shape[1])
                            for p in flat_params[0::2])
    transcendentals = b_pad * lat_pad  # exp(log_sigma)
    bytes_accessed = int(param_bytes
                         + (x_p.size + eps_p.size + b_pad * out_pad) * 4)

    kernel = functools.partial(_vae_forward_kernel, n_enc_hidden, n_dec)

    out_p = pl.pallas_call(
        kernel,
        out_shape=jax.ShapeDtypeStruct((b_pad, out_pad), jnp.float32),
        grid=grid,
        in_specs=[x_spec, eps_spec] + w_specs,
        out_specs=out_spec,
        compiler_params=pltpu.CompilerParams(
            dimension_semantics=("parallel",),
            vmem_limit_bytes=vmem_limit),
        cost_estimate=pl.CostEstimate(
            flops=int(flops),
            transcendentals=int(transcendentals),
            bytes_accessed=int(bytes_accessed)),
    )(x_p, eps_p, *flat_params)

    return out_p[:B, :in_size]


def init_linear(key, fan_in, fan_out):
    """PyTorch nn.Linear default init (uniform +/- 1/sqrt(fan_in)), deterministic."""
    kw, kb = jax.random.split(key)
    bound = 1.0 / (fan_in ** 0.5)
    w = jax.random.uniform(kw, (fan_in, fan_out), jnp.float32, -bound, bound)
    b = jax.random.uniform(kb, (fan_out,), jnp.float32, -bound, bound)
    return w, b


def build_vae_params(key, in_size, cond_in, latent_s, enc_w, enc_l, dec_w, dec_l):
    l_enc = [in_size + cond_in] + [enc_w] * enc_l + [2 * latent_s]
    l_dec = [latent_s + cond_in] + [dec_w] * dec_l + [in_size]
    enc_params, dec_params = [], []
    for (l1, l2) in zip(l_enc[:-1], l_enc[1:]):
        key, sub = jax.random.split(key)
        enc_params.append(init_linear(sub, l1, l2))
    for (l1, l2) in zip(l_dec[:-1], l_dec[1:]):
        key, sub = jax.random.split(key)
        dec_params.append(init_linear(sub, l1, l2))
    return enc_params, dec_params


def reference_forward(x, eps, enc_params, dec_params, latent_s, mxu_dtype=None):
    """Pure-JAX reference of VAElinear.forward.

    If mxu_dtype is given, emulates the kernel's matmul-operand rounding
    (operands cast to mxu_dtype, accumulation in f32) for a tight comparison.
    """
    def cast(a):
        if mxu_dtype is None:
            return a.astype(jnp.float32)
        return a.astype(mxu_dtype).astype(jnp.float32)

    h = x.astype(jnp.float32)
    for i, (w, b) in enumerate(enc_params):
        h = cast(h) @ cast(w) + b
        if i != len(enc_params) - 1:
            h = jnp.maximum(h, 0.0)
    mu_z, log_sigma_z = h[:, :latent_s], h[:, latent_s:]
    z = mu_z + jnp.exp(log_sigma_z) * eps
    h = z
    for i, (w, b) in enumerate(dec_params):
        h = cast(h) @ cast(w) + b
        if i != len(dec_params) - 1:
            h = jnp.maximum(h, 0.0)
    return h


if __name__ == "__main__":
    # Small config consistent with the module (cond_in=0 so forward() is
    # well-defined); batch large enough that the batch grid has >1 step.
    B = 256
    in_size = 16
    cond_in = 0
    latent_s = 8
    enc_w = dec_w = 32
    enc_l = dec_l = 2

    key = jax.random.PRNGKey(0)
    k_params, k_x, k_eps = jax.random.split(key, 3)

    enc_params, dec_params = build_vae_params(
        k_params, in_size, cond_in, latent_s, enc_w, enc_l, dec_w, dec_l)

    x = jax.random.normal(k_x, (B, in_size), jnp.float32)
    # Noise for the reparameterization trick (torch.randn equivalent), passed in
    # so the kernel is deterministic.
    eps = jax.random.normal(k_eps, (B, latent_s), jnp.float32)

    out = vae_linear_forward(x, eps, enc_params, dec_params, latent_s,
                             block_b=128)
    out = jax.block_until_ready(out)
    assert out.shape == (B, in_size)

    # Tight check against a reference emulating the kernel's bf16 matmul operands.
    ref_bf16 = reference_forward(x, eps, enc_params, dec_params, latent_s,
                                 mxu_dtype=jnp.bfloat16)
    assert jnp.allclose(out, ref_bf16, atol=2e-3, rtol=2e-3), \
        "mismatch vs bf16-emulated reference"

    # Sanity check against the pure-f32 PyTorch-equivalent semantics.
    ref_f32 = reference_forward(x, eps, enc_params, dec_params, latent_s)
    assert jnp.allclose(out, ref_f32, atol=7e-2, rtol=7e-2), \
        "mismatch vs f32 reference"

    print("KERNEL_OK")
</pallas_src>

<mosaic_0001>
module attributes {stable_mosaic.version = 11 : i64} {
  func.func @_vae_forward_kernel(%arg0: i32, %arg1: memref<128x128xf32, #tpu.memory_space<vmem>>, %arg2: memref<128x128xf32, #tpu.memory_space<vmem>>, %arg3: memref<128x128xbf16, #tpu.memory_space<vmem>>, %arg4: memref<1x128xf32, #tpu.memory_space<vmem>>, %arg5: memref<128x128xbf16, #tpu.memory_space<vmem>>, %arg6: memref<1x128xf32, #tpu.memory_space<vmem>>, %arg7: memref<128x128xbf16, #tpu.memory_space<vmem>>, %arg8: memref<1x128xf32, #tpu.memory_space<vmem>>, %arg9: memref<128x128xbf16, #tpu.memory_space<vmem>>, %arg10: memref<1x128xf32, #tpu.memory_space<vmem>>, %arg11: memref<128x128xbf16, #tpu.memory_space<vmem>>, %arg12: memref<1x128xf32, #tpu.memory_space<vmem>>, %arg13: memref<128x128xbf16, #tpu.memory_space<vmem>>, %arg14: memref<1x128xf32, #tpu.memory_space<vmem>>, %arg15: memref<128x128xbf16, #tpu.memory_space<vmem>>, %arg16: memref<1x128xf32, #tpu.memory_space<vmem>>, %arg17: memref<128x128xf32, #tpu.memory_space<vmem>>) attributes {dimension_semantics = [#tpu.dimension_semantics<parallel>], iteration_bounds = array<i64: 2>, scalar_prefetch = 0 : i64, scratch_operands = 0 : i64, tpu.core_type = #tpu.core_type<tc>, window_params = [{transform_indices = @transform_0, window_bounds = array<i64: 128, 128>}, {transform_indices = @transform_1, window_bounds = array<i64: 128, 128>}, {pipeline_mode = #tpu.pipeline_mode<synchronous>, transform_indices = @transform_2, window_bounds = array<i64: 128, 128>}, {pipeline_mode = #tpu.pipeline_mode<synchronous>, transform_indices = @transform_3, window_bounds = array<i64: 1, 128>}, {pipeline_mode = #tpu.pipeline_mode<synchronous>, transform_indices = @transform_4, window_bounds = array<i64: 128, 128>}, {pipeline_mode = #tpu.pipeline_mode<synchronous>, transform_indices = @transform_5, window_bounds = array<i64: 1, 128>}, {pipeline_mode = #tpu.pipeline_mode<synchronous>, transform_indices = @transform_6, window_bounds = array<i64: 128, 128>}, {pipeline_mode = #tpu.pipeline_mode<synchronous>, transform_indices = @transform_7, window_bounds = array<i64: 1, 128>}, {pipeline_mode = #tpu.pipeline_mode<synchronous>, transform_indices = @transform_8, window_bounds = array<i64: 128, 128>}, {pipeline_mode = #tpu.pipeline_mode<synchronous>, transform_indices = @transform_9, window_bounds = array<i64: 1, 128>}, {pipeline_mode = #tpu.pipeline_mode<synchronous>, transform_indices = @transform_10, window_bounds = array<i64: 128, 128>}, {pipeline_mode = #tpu.pipeline_mode<synchronous>, transform_indices = @transform_11, window_bounds = array<i64: 1, 128>}, {pipeline_mode = #tpu.pipeline_mode<synchronous>, transform_indices = @transform_12, window_bounds = array<i64: 128, 128>}, {pipeline_mode = #tpu.pipeline_mode<synchronous>, transform_indices = @transform_13, window_bounds = array<i64: 1, 128>}, {pipeline_mode = #tpu.pipeline_mode<synchronous>, transform_indices = @transform_14, window_bounds = array<i64: 128, 128>}, {pipeline_mode = #tpu.pipeline_mode<synchronous>, transform_indices = @transform_15, window_bounds = array<i64: 1, 128>}, {transform_indices = @transform_16, window_bounds = array<i64: 128, 128>}]} {
    %c0 = arith.constant 0 : index
    %c0_0 = arith.constant 0 : index
    %0 = vector.load %arg1[%c0, %c0_0] : memref<128x128xf32, #tpu.memory_space<vmem>>, vector<128x128xf32>
    %1 = arith.truncf %0 : vector<128x128xf32> to vector<128x128xbf16>
    %c0_1 = arith.constant 0 : index
    %c0_2 = arith.constant 0 : index
    %2 = vector.load %arg3[%c0_1, %c0_2] : memref<128x128xbf16, #tpu.memory_space<vmem>>, vector<128x128xbf16>
    %cst = arith.constant dense<0.000000e+00> : vector<128x128xf32>
    %3 = tpu.matmul %1, %2, %cst {dimension_numbers = #tpu.dot_dimension_numbers<[1], [0], [0], [1], [0, 0, 1, 1], [], []>} : vector<128x128xbf16>, vector<128x128xbf16>, vector<128x128xf32> -> vector<128x128xf32>
    %c0_3 = arith.constant 0 : index
    %c0_4 = arith.constant 0 : index
    %4 = vector.load %arg4[%c0_3, %c0_4] : memref<1x128xf32, #tpu.memory_space<vmem>>, vector<1x128xf32>
    %5 = vector.broadcast %4 : vector<1x128xf32> to vector<128x128xf32>
    %6 = arith.addf %3, %5 : vector<128x128xf32>
    %cst_5 = arith.constant 0.000000e+00 : f32
    %7 = vector.broadcast %cst_5 : f32 to vector<128x128xf32>
    %8 = arith.maximumf %6, %7 : vector<128x128xf32>
    %9 = arith.truncf %8 : vector<128x128xf32> to vector<128x128xbf16>
    %c0_6 = arith.constant 0 : index
    %c0_7 = arith.constant 0 : index
    %10 = vector.load %arg5[%c0_6, %c0_7] : memref<128x128xbf16, #tpu.memory_space<vmem>>, vector<128x128xbf16>
    %cst_8 = arith.constant dense<0.000000e+00> : vector<128x128xf32>
    %11 = tpu.matmul %9, %10, %cst_8 {dimension_numbers = #tpu.dot_dimension_numbers<[1], [0], [0], [1], [0, 0, 1, 1], [], []>} : vector<128x128xbf16>, vector<128x128xbf16>, vector<128x128xf32> -> vector<128x128xf32>
    %c0_9 = arith.constant 0 : index
    %c0_10 = arith.constant 0 : index
    %12 = vector.load %arg6[%c0_9, %c0_10] : memref<1x128xf32, #tpu.memory_space<vmem>>, vector<1x128xf32>
    %13 = vector.broadcast %12 : vector<1x128xf32> to vector<128x128xf32>
    %14 = arith.addf %11, %13 : vector<128x128xf32>
    %cst_11 = arith.constant 0.000000e+00 : f32
    %15 = vector.broadcast %cst_11 : f32 to vector<128x128xf32>
    %16 = arith.maximumf %14, %15 : vector<128x128xf32>
    %17 = arith.truncf %16 : vector<128x128xf32> to vector<128x128xbf16>
    %c0_12 = arith.constant 0 : index
    %c0_13 = arith.constant 0 : index
    %18 = vector.load %arg7[%c0_12, %c0_13] : memref<128x128xbf16, #tpu.memory_space<vmem>>, vector<128x128xbf16>
    %cst_14 = arith.constant dense<0.000000e+00> : vector<128x128xf32>
    %19 = tpu.matmul %17, %18, %cst_14 {dimension_numbers = #tpu.dot_dimension_numbers<[1], [0], [0], [1], [0, 0, 1, 1], [], []>} : vector<128x128xbf16>, vector<128x128xbf16>, vector<128x128xf32> -> vector<128x128xf32>
    %c0_15 = arith.constant 0 : index
    %c0_16 = arith.constant 0 : index
    %20 = vector.load %arg8[%c0_15, %c0_16] : memref<1x128xf32, #tpu.memory_space<vmem>>, vector<1x128xf32>
    %21 = vector.broadcast %20 : vector<1x128xf32> to vector<128x128xf32>
    %22 = arith.addf %19, %21 : vector<128x128xf32>
    %23 = arith.truncf %16 : vector<128x128xf32> to vector<128x128xbf16>
    %c0_17 = arith.constant 0 : index
    %c0_18 = arith.constant 0 : index
    %24 = vector.load %arg9[%c0_17, %c0_18] : memref<128x128xbf16, #tpu.memory_space<vmem>>, vector<128x128xbf16>
    %cst_19 = arith.constant dense<0.000000e+00> : vector<128x128xf32>
    %25 = tpu.matmul %23, %24, %cst_19 {dimension_numbers = #tpu.dot_dimension_numbers<[1], [0], [0], [1], [0, 0, 1, 1], [], []>} : vector<128x128xbf16>, vector<128x128xbf16>, vector<128x128xf32> -> vector<128x128xf32>
    %c0_20 = arith.constant 0 : index
    %c0_21 = arith.constant 0 : index
    %26 = vector.load %arg10[%c0_20, %c0_21] : memref<1x128xf32, #tpu.memory_space<vmem>>, vector<1x128xf32>
    %27 = vector.broadcast %26 : vector<1x128xf32> to vector<128x128xf32>
    %28 = arith.addf %25, %27 : vector<128x128xf32>
    %29 = math.exp %28 : vector<128x128xf32>
    %c0_22 = arith.constant 0 : index
    %c0_23 = arith.constant 0 : index
    %30 = vector.load %arg2[%c0_22, %c0_23] : memref<128x128xf32, #tpu.memory_space<vmem>>, vector<128x128xf32>
    %31 = arith.mulf %29, %30 : vector<128x128xf32>
    %32 = arith.addf %22, %31 : vector<128x128xf32>
    %33 = arith.truncf %32 : vector<128x128xf32> to vector<128x128xbf16>
    %c0_24 = arith.constant 0 : index
    %c0_25 = arith.constant 0 : index
    %34 = vector.load %arg11[%c0_24, %c0_25] : memref<128x128xbf16, #tpu.memory_space<vmem>>, vector<128x128xbf16>
    %cst_26 = arith.constant dense<0.000000e+00> : vector<128x128xf32>
    %35 = tpu.matmul %33, %34, %cst_26 {dimension_numbers = #tpu.dot_dimension_numbers<[1], [0], [0], [1], [0, 0, 1, 1], [], []>} : vector<128x128xbf16>, vector<128x128xbf16>, vector<128x128xf32> -> vector<128x128xf32>
    %c0_27 = arith.constant 0 : index
    %c0_28 = arith.constant 0 : index
    %36 = vector.load %arg12[%c0_27, %c0_28] : memref<1x128xf32, #tpu.memory_space<vmem>>, vector<1x128xf32>
    %37 = vector.broadcast %36 : vector<1x128xf32> to vector<128x128xf32>
    %38 = arith.addf %35, %37 : vector<128x128xf32>
    %cst_29 = arith.constant 0.000000e+00 : f32
    %39 = vector.broadcast %cst_29 : f32 to vector<128x128xf32>
    %40 = arith.maximumf %38, %39 : vector<128x128xf32>
    %41 = arith.truncf %40 : vector<128x128xf32> to vector<128x128xbf16>
    %c0_30 = arith.constant 0 : index
    %c0_31 = arith.constant 0 : index
    %42 = vector.load %arg13[%c0_30, %c0_31] : memref<128x128xbf16, #tpu.memory_space<vmem>>, vector<128x128xbf16>
    %cst_32 = arith.constant dense<0.000000e+00> : vector<128x128xf32>
    %43 = tpu.matmul %41, %42, %cst_32 {dimension_numbers = #tpu.dot_dimension_numbers<[1], [0], [0], [1], [0, 0, 1, 1], [], []>} : vector<128x128xbf16>, vector<128x128xbf16>, vector<128x128xf32> -> vector<128x128xf32>
    %c0_33 = arith.constant 0 : index
    %c0_34 = arith.constant 0 : index
    %44 = vector.load %arg14[%c0_33, %c0_34] : memref<1x128xf32, #tpu.memory_space<vmem>>, vector<1x128xf32>
    %45 = vector.broadcast %44 : vector<1x128xf32> to vector<128x128xf32>
    %46 = arith.addf %43, %45 : vector<128x128xf32>
    %cst_35 = arith.constant 0.000000e+00 : f32
    %47 = vector.broadcast %cst_35 : f32 to vector<128x128xf32>
    %48 = arith.maximumf %46, %47 : vector<128x128xf32>
    %49 = arith.truncf %48 : vector<128x128xf32> to vector<128x128xbf16>
    %c0_36 = arith.constant 0 : index
    %c0_37 = arith.constant 0 : index
    %50 = vector.load %arg15[%c0_36, %c0_37] : memref<128x128xbf16, #tpu.memory_space<vmem>>, vector<128x128xbf16>
    %cst_38 = arith.constant dense<0.000000e+00> : vector<128x128xf32>
    %51 = tpu.matmul %49, %50, %cst_38 {dimension_numbers = #tpu.dot_dimension_numbers<[1], [0], [0], [1], [0, 0, 1, 1], [], []>} : vector<128x128xbf16>, vector<128x128xbf16>, vector<128x128xf32> -> vector<128x128xf32>
    %c0_39 = arith.constant 0 : index
    %c0_40 = arith.constant 0 : index
    %52 = vector.load %arg16[%c0_39, %c0_40] : memref<1x128xf32, #tpu.memory_space<vmem>>, vector<1x128xf32>
    %53 = vector.broadcast %52 : vector<1x128xf32> to vector<128x128xf32>
    %54 = arith.addf %51, %53 : vector<128x128xf32>
    %c0_41 = arith.constant 0 : index
    %c0_42 = arith.constant 0 : index
    %55 = vector.load %arg17[%c0_41, %c0_42] : memref<128x128xf32, #tpu.memory_space<vmem>>, vector<128x128xf32>
    tpu.vector_store %arg17[%c0_41, %c0_42], %54 {strides = array<i32>} : memref<128x128xf32, #tpu.memory_space<vmem>>, vector<128x128xf32>,
    return
  }
  func.func @transform_0(%arg0: i32) -> (i32, i32) {
    %c0_i32 = arith.constant 0 : i32
    %c0_i32_0 = arith.constant 0 : i32
    return %arg0, %c0_i32 : i32, i32
  }
  func.func @transform_1(%arg0: i32) -> (i32, i32) {
    %c0_i32 = arith.constant 0 : i32
    %c0_i32_0 = arith.constant 0 : i32
    return %arg0, %c0_i32 : i32, i32
  }
  func.func @transform_2(%arg0: i32) -> (i32, i32) {
    %c0_i32 = arith.constant 0 : i32
    %c0_i32_0 = arith.constant 0 : i32
    %c0_i32_1 = arith.constant 0 : i32
    return %c0_i32, %c0_i32_0 : i32, i32
  }
  func.func @transform_3(%arg0: i32) -> (i32, i32) {
    %c0_i32 = arith.constant 0 : i32
    %c0_i32_0 = arith.constant 0 : i32
    %c0_i32_1 = arith.constant 0 : i32
    return %c0_i32, %c0_i32_0 : i32, i32
  }
  func.func @transform_4(%arg0: i32) -> (i32, i32) {
    %c0_i32 = arith.constant 0 : i32
    %c0_i32_0 = arith.constant 0 : i32
    %c0_i32_1 = arith.constant 0 : i32
    return %c0_i32, %c0_i32_0 : i32, i32
  }
  func.func @transform_5(%arg0: i32) -> (i32, i32) {
    %c0_i32 = arith.constant 0 : i32
    %c0_i32_0 = arith.constant 0 : i32
    %c0_i32_1 = arith.constant 0 : i32
    return %c0_i32, %c0_i32_0 : i32, i32
  }
  func.func @transform_6(%arg0: i32) -> (i32, i32) {
    %c0_i32 = arith.constant 0 : i32
    %c0_i32_0 = arith.constant 0 : i32
    %c0_i32_1 = arith.constant 0 : i32
    return %c0_i32, %c0_i32_0 : i32, i32
  }
  func.func @transform_7(%arg0: i32) -> (i32, i32) {
    %c0_i32 = arith.constant 0 : i32
    %c0_i32_0 = arith.constant 0 : i32
    %c0_i32_1 = arith.constant 0 : i32
    return %c0_i32, %c0_i32_0 : i32, i32
  }
  func.func @transform_8(%arg0: i32) -> (i32, i32) {
    %c0_i32 = arith.constant 0 : i32
    %c0_i32_0 = arith.constant 0 : i32
    %c0_i32_1 = arith.constant 0 : i32
    return %c0_i32, %c0_i32_0 : i32, i32
  }
  func.func @transform_9(%arg0: i32) -> (i32, i32) {
    %c0_i32 = arith.constant 0 : i32
    %c0_i32_0 = arith.constant 0 : i32
    %c0_i32_1 = arith.constant 0 : i32
    return %c0_i32, %c0_i32_0 : i32, i32
  }
  func.func @transform_10(%arg0: i32) -> (i32, i32) {
    %c0_i32 = arith.constant 0 : i32
    %c0_i32_0 = arith.constant 0 : i32
    %c0_i32_1 = arith.constant 0 : i32
    return %c0_i32, %c0_i32_0 : i32, i32
  }
  func.func @transform_11(%arg0: i32) -> (i32, i32) {
    %c0_i32 = arith.constant 0 : i32
    %c0_i32_0 = arith.constant 0 : i32
    %c0_i32_1 = arith.constant 0 : i32
    return %c0_i32, %c0_i32_0 : i32, i32
  }
  func.func @transform_12(%arg0: i32) -> (i32, i32) {
    %c0_i32 = arith.constant 0 : i32
    %c0_i32_0 = arith.constant 0 : i32
    %c0_i32_1 = arith.constant 0 : i32
    return %c0_i32, %c0_i32_0 : i32, i32
  }
  func.func @transform_13(%arg0: i32) -> (i32, i32) {
    %c0_i32 = arith.constant 0 : i32
    %c0_i32_0 = arith.constant 0 : i32
    %c0_i32_1 = arith.constant 0 : i32
    return %c0_i32, %c0_i32_0 : i32, i32
  }
  func.func @transform_14(%arg0: i32) -> (i32, i32) {
    %c0_i32 = arith.constant 0 : i32
    %c0_i32_0 = arith.constant 0 : i32
    %c0_i32_1 = arith.constant 0 : i32
    return %c0_i32, %c0_i32_0 : i32, i32
  }
  func.func @transform_15(%arg0: i32) -> (i32, i32) {
    %c0_i32 = arith.constant 0 : i32
    %c0_i32_0 = arith.constant 0 : i32
    %c0_i32_1 = arith.constant 0 : i32
    return %c0_i32, %c0_i32_0 : i32, i32
  }
  func.func @transform_16(%arg0: i32) -> (i32, i32) {
    %c0_i32 = arith.constant 0 : i32
    %c0_i32_0 = arith.constant 0 : i32
    return %arg0, %c0_i32 : i32, i32
  }
}

</mosaic_0001>

<llo_original>
// kernel: tpu_custom_call.1
$region0: #{tpu_custom_call.1}
  #allocation0 [shape = 'u32[]', space=smem, size = 0x4, offset = 0x4, fixed_abs, tag = 'smem constant byte address 0x4 - core index']
  #allocation1 [shape = 'u32[72,128]{1,0:T(1,128)}', space=vmem, size = 0x9000, scoped, tag = 'internal scratch']
  %s0 = inlined_call_operand.hbm [shape: f32[256,128], index: 0, kind: input, shape index: {}]
  %s1 = inlined_call_operand.hbm [shape: f32[256,128], index: 1, kind: input, shape index: {}]
  %s2 = inlined_call_operand.hbm [shape: bf16[128,128], index: 2, kind: input, shape index: {}]
  %s3 = inlined_call_operand.vmem [shape: f32[1,128], index: 3, kind: input, shape index: {}]
  %s4 = inlined_call_operand.hbm [shape: bf16[128,128], index: 4, kind: input, shape index: {}]
  %s5 = inlined_call_operand.vmem [shape: f32[1,128], index: 5, kind: input, shape index: {}]
  %s6 = inlined_call_operand.hbm [shape: bf16[128,128], index: 6, kind: input, shape index: {}]
  %s7 = inlined_call_operand.vmem [shape: f32[1,128], index: 7, kind: input, shape index: {}]
  %s8 = inlined_call_operand.hbm [shape: bf16[128,128], index: 8, kind: input, shape index: {}]
  %s9 = inlined_call_operand.vmem [shape: f32[1,128], index: 9, kind: input, shape index: {}]
  %s10 = inlined_call_operand.hbm [shape: bf16[128,128], index: 10, kind: input, shape index: {}]
  %s11 = inlined_call_operand.vmem [shape: f32[1,128], index: 11, kind: input, shape index: {}]
  %s12 = inlined_call_operand.hbm [shape: bf16[128,128], index: 12, kind: input, shape index: {}]
  %s13 = inlined_call_operand.vmem [shape: f32[1,128], index: 13, kind: input, shape index: {}]
  %s14 = inlined_call_operand.hbm [shape: bf16[128,128], index: 14, kind: input, shape index: {}]
  %s15 = inlined_call_operand.vmem [shape: f32[1,128], index: 15, kind: input, shape index: {}]
  %s16 = inlined_call_operand.hbm [shape: f32[256,128], index: 16, kind: output, shape index: {}]
  %s17 = sld [smem:[#allocation0]]
  $region133: #{tpu_custom_call.1} parent=0
    _
  %s19 = ssub.s32 1, %s17
  %s20 = scalar_select 0, %s19, %s17
  $region1: #{tpu_custom_call.1} parent=0
    #allocation2 [shape = 'u8[131072]{0}', space=vmem, size = 0x20000, scoped, tag = 'input window, operand 0']
    #allocation3 [shape = 's32[2]{0}', space=sflag, size = 0x8, scoped, tag = 'scoped memory for tpu_custom_call.1']
    #allocation4 [shape = 's32[2]{0}', space=sflag, size = 0x8, scoped, tag = 'scoped memory for tpu_custom_call.1']
    #allocation5 [shape = 'u8[131072]{0}', space=vmem, size = 0x20000, scoped, tag = 'input window, operand 1']
    #allocation6 [shape = 's32[2]{0}', space=sflag, size = 0x8, scoped, tag = 'scoped memory for tpu_custom_call.1']
    #allocation7 [shape = 'u8[32768]{0}', space=vmem, size = 0x8000, scoped, tag = 'input window, operand 2, single buffered']
    #allocation8 [shape = 'u8[32768]{0}', space=vmem, size = 0x8000, scoped, tag = 'input window, operand 4, single buffered']
    #allocation9 [shape = 's32[1]{0}', space=sflag, size = 0x4, scoped, tag = 'scoped memory for tpu_custom_call.1']
    #allocation10 [shape = 'u8[32768]{0}', space=vmem, size = 0x8000, scoped, tag = 'input window, operand 6, single buffered']
    #allocation11 [shape = 'u8[32768]{0}', space=vmem, size = 0x8000, scoped, tag = 'input window, operand 8, single buffered']
    #allocation12 [shape = 's32[1]{0}', space=sflag, size = 0x4, scoped, tag = 'scoped memory for tpu_custom_call.1']
    #allocation13 [shape = 'u8[32768]{0}', space=vmem, size = 0x8000, scoped, tag = 'input window, operand 10, single buffered']
    #allocation14 [shape = 'u8[32768]{0}', space=vmem, size = 0x8000, scoped, tag = 'input window, operand 12, single buffered']
    #allocation15 [shape = 's32[1]{0}', space=sflag, size = 0x4, scoped, tag = 'scoped memory for tpu_custom_call.1']
    #allocation16 [shape = 'u8[32768]{0}', space=vmem, size = 0x8000, scoped, tag = 'input window, operand 14, single buffered']
    #allocation17 [shape = 'u8[131072]{0}', space=vmem, size = 0x20000, scoped, tag = 'output window, operand 0']
    %21 = vsyncpa [#allocation3], 0
    %s22 = scalar_lea.sflag [#allocation3], 1
    %23 = vsyncpa %s22, 0
    %24 = vsyncpa [#allocation6], 0
    %s25 = scalar_lea.sflag [#allocation6], 1
    %26 = vsyncpa %s25, 0
    %27 = vsyncpa [#allocation9], 0
    %28 = vsyncpa [#allocation12], 0
    %29 = vsyncpa [#allocation15], 0
    %30 = vsyncpa [#allocation4], 0
    %s31 = scalar_lea.sflag [#allocation4], 1
    %32 = vsyncpa %s31, 0
    loop: start=0, step=1, limit=4
    $region2: #{tpu_custom_call.1} parent=1 // loop_pre_header
      _
    $region3: #{tpu_custom_call.1} parent=1 // loop_header
      %s34 = sphi 0, %s38
      %p35 = scmp.ge.s32.totalorder %s34, 4
      %s44 = sphi 0, %s46
      %s47 = sphi 0, %s44
      %s48 = sphi 0, %s47
      %s64 = sphi 0, %s48
      %s70 = sphi 0, %s72
      %s73 = sphi 0, %s70
      %s74 = sphi 0, %s73
      %s90 = sphi 0, %s74
      %s94 = sphi 0, %s94
      %s96 = sphi 0, %s94
      %s97 = sphi 0, %s96
      %s111 = sphi 0, %s97
      %s115 = sphi 0, %s115
      %s117 = sphi 0, %s115
      %s118 = sphi 0, %s117
      %s132 = sphi 0, %s118
      %s136 = sphi 0, %s136
      %s138 = sphi 0, %s136
      %s139 = sphi 0, %s138
      %s153 = sphi 0, %s139
      %s157 = sphi 0, %s157
      %s159 = sphi 0, %s157
      %s160 = sphi 0, %s159
      %s174 = sphi 0, %s160
      %s178 = sphi 0, %s178
      %s180 = sphi 0, %s178
      %s181 = sphi 0, %s180
      %s195 = sphi 0, %s181
      %s199 = sphi 0, %s199
      %s201 = sphi 0, %s199
      %s202 = sphi 0, %s201
      %s216 = sphi 0, %s202
      %s220 = sphi 0, %s220
      %s222 = sphi 0, %s220
      %s223 = sphi 0, %s222
      %s237 = sphi 0, %s223
      %s241 = sphi 0, %s241
      %s243 = sphi 0, %s241
      %s244 = sphi 0, %s243
      %s258 = sphi 0, %s244
      %s262 = sphi 0, %s262
      %s264 = sphi 0, %s262
      %s265 = sphi 0, %s264
      %s279 = sphi 0, %s265
      %s283 = sphi 0, %s283
      %s285 = sphi 0, %s283
      %s286 = sphi 0, %s285
      %s300 = sphi 0, %s286
      %s304 = sphi 0, %s304
      %s306 = sphi 0, %s304
      %s307 = sphi 0, %s306
      %s321 = sphi 0, %s307
      %s325 = sphi 0, %s325
      %s327 = sphi 0, %s325
      %s328 = sphi 0, %s327
      %s342 = sphi 0, %s328
      %s346 = sphi 0, %s346
      %s348 = sphi 0, %s346
      %s349 = sphi 0, %s348
      %s363 = sphi 0, %s349
      %s367 = sphi 0, %s367
      %s369 = sphi 0, %s367
      %s370 = sphi 0, %s369
      %s384 = sphi 0, %s370
      %s390 = sphi 0, %s392
      %s393 = sphi 0, %s390
      %s394 = sphi 0, %s393
      %s410 = sphi 0, %s394
    $region4: #{tpu_custom_call.1} parent=1 // loop_header_branch
      %37 = sbr.rel (%p35) target = $region8
    $region5: #{tpu_custom_call.1} parent=1 // loop_body
      %s39 = ssub.s32 %s34, 1
      %s40 = ssub.s32 %s34, 2
      %s41 = sadd.s32 %s34, 1
      %s42 = ssub.s32 %s34, %s41
      %p43 = scmp.eq.s32.totalorder %s42, 0
      %s45 = sadd.s32 %s44, 1
      %s46 = scalar_select %p43, %s44, %s45
      %p49 = pneg %p43
      %p50 = scmp.eq.s32.totalorder %s34, 1
      %p51 = por %p49, %p50
      %p52 = scmp.ne.s32.totalorder %s44, %s47
      %p53 = scmp.eq.s32.totalorder %s34, 0
      %p54 = por %p52, %p53
      %p55 = scmp.ne.s32.totalorder %s44, %s47
      %p56 = scmp.eq.s32.totalorder %s39, 1
      %p57 = por %p55, %p56
      %p58 = scmp.ne.s32.totalorder %s47, %s48
      %p59 = scmp.eq.s32.totalorder %s39, 0
      %p60 = por %p58, %p59
      %p61 = scmp.ne.s32.totalorder %s47, %s48
      %p62 = scmp.eq.s32.totalorder %s40, 1
      %p63 = por %p61, %p62
      %p65 = scmp.ne.s32.totalorder %s48, %s64
      %p66 = scmp.eq.s32.totalorder %s40, 0
      %p67 = por %p65, %p66
      %s68 = ssub.s32 %s34, %s41
      %p69 = scmp.eq.s32.totalorder %s68, 0
      %s71 = sadd.s32 %s70, 1
      %s72 = scalar_select %p69, %s70, %s71
      %p75 = pneg %p69
      %p76 = scmp.eq.s32.totalorder %s34, 1
      %p77 = por %p75, %p76
      %p78 = scmp.ne.s32.totalorder %s70, %s73
      %p79 = scmp.eq.s32.totalorder %s34, 0
      %p80 = por %p78, %p79
      %p81 = scmp.ne.s32.totalorder %s70, %s73
      %p82 = scmp.eq.s32.totalorder %s39, 1
      %p83 = por %p81, %p82
      %p84 = scmp.ne.s32.totalorder %s73, %s74
      %p85 = scmp.eq.s32.totalorder %s39, 0
      %p86 = por %p84, %p85
      %p87 = scmp.ne.s32.totalorder %s73, %s74
      %p88 = scmp.eq.s32.totalorder %s40, 1
      %p89 = por %p87, %p88
      %p91 = scmp.ne.s32.totalorder %s74, %s90
      %p92 = scmp.eq.s32.totalorder %s40, 0
      %p93 = por %p91, %p92
      %s95 = sadd.s32 %s94, 1
      %p98 = scmp.eq.s32.totalorder %s34, 1
      %p99 = scmp.ne.s32.totalorder %s94, %s96
      %p100 = scmp.eq.s32.totalorder %s34, 0
      %p101 = por %p99, %p100
      %p102 = scmp.ne.s32.totalorder %s94, %s96
      %p103 = scmp.eq.s32.totalorder %s39, 1
      %p104 = por %p102, %p103
      %p105 = scmp.ne.s32.totalorder %s96, %s97
      %p106 = scmp.eq.s32.totalorder %s39, 0
      %p107 = por %p105, %p106
      %p108 = scmp.ne.s32.totalorder %s96, %s97
      %p109 = scmp.eq.s32.totalorder %s40, 1
      %p110 = por %p108, %p109
      %p112 = scmp.ne.s32.totalorder %s97, %s111
      %p113 = scmp.eq.s32.totalorder %s40, 0
      %p114 = por %p112, %p113
      %s116 = sadd.s32 %s115, 1
      %p119 = scmp.eq.s32.totalorder %s34, 1
      %p120 = scmp.ne.s32.totalorder %s115, %s117
      %p121 = scmp.eq.s32.totalorder %s34, 0
      %p122 = por %p120, %p121
      %p123 = scmp.ne.s32.totalorder %s115, %s117
      %p124 = scmp.eq.s32.totalorder %s39, 1
      %p125 = por %p123, %p124
      %p126 = scmp.ne.s32.totalorder %s117, %s118
      %p127 = scmp.eq.s32.totalorder %s39, 0
      %p128 = por %p126, %p127
      %p129 = scmp.ne.s32.totalorder %s117, %s118
      %p130 = scmp.eq.s32.totalorder %s40, 1
      %p131 = por %p129, %p130
      %p133 = scmp.ne.s32.totalorder %s118, %s132
      %p134 = scmp.eq.s32.totalorder %s40, 0
      %p135 = por %p133, %p134
      %s137 = sadd.s32 %s136, 1
      %p140 = scmp.eq.s32.totalorder %s34, 1
      %p141 = scmp.ne.s32.totalorder %s136, %s138
      %p142 = scmp.eq.s32.totalorder %s34, 0
      %p143 = por %p141, %p142
      %p144 = scmp.ne.s32.totalorder %s136, %s138
      %p145 = scmp.eq.s32.totalorder %s39, 1
      %p146 = por %p144, %p145
      %p147 = scmp.ne.s32.totalorder %s138, %s139
      %p148 = scmp.eq.s32.totalorder %s39, 0
      %p149 = por %p147, %p148
      %p150 = scmp.ne.s32.totalorder %s138, %s139
      %p151 = scmp.eq.s32.totalorder %s40, 1
      %p152 = por %p150, %p151
      %p154 = scmp.ne.s32.totalorder %s139, %s153
      %p155 = scmp.eq.s32.totalorder %s40, 0
      %p156 = por %p154, %p155
      %s158 = sadd.s32 %s157, 1
      %p161 = scmp.eq.s32.totalorder %s34, 1
      %p162 = scmp.ne.s32.totalorder %s157, %s159
      %p163 = scmp.eq.s32.totalorder %s34, 0
      %p164 = por %p162, %p163
      %p165 = scmp.ne.s32.totalorder %s157, %s159
      %p166 = scmp.eq.s32.totalorder %s39, 1
      %p167 = por %p165, %p166
      %p168 = scmp.ne.s32.totalorder %s159, %s160
      %p169 = scmp.eq.s32.totalorder %s39, 0
      %p170 = por %p168, %p169
      %p171 = scmp.ne.s32.totalorder %s159, %s160
      %p172 = scmp.eq.s32.totalorder %s40, 1
      %p173 = por %p171, %p172
      %p175 = scmp.ne.s32.totalorder %s160, %s174
      %p176 = scmp.eq.s32.totalorder %s40, 0
      %p177 = por %p175, %p176
      %s179 = sadd.s32 %s178, 1
      %p182 = scmp.eq.s32.totalorder %s34, 1
      %p183 = scmp.ne.s32.totalorder %s178, %s180
      %p184 = scmp.eq.s32.totalorder %s34, 0
      %p185 = por %p183, %p184
      %p186 = scmp.ne.s32.totalorder %s178, %s180
      %p187 = scmp.eq.s32.totalorder %s39, 1
      %p188 = por %p186, %p187
      %p189 = scmp.ne.s32.totalorder %s180, %s181
      %p190 = scmp.eq.s32.totalorder %s39, 0
      %p191 = por %p189, %p190
      %p192 = scmp.ne.s32.totalorder %s180, %s181
      %p193 = scmp.eq.s32.totalorder %s40, 1
      %p194 = por %p192, %p193
      %p196 = scmp.ne.s32.totalorder %s181, %s195
      %p197 = scmp.eq.s32.totalorder %s40, 0
      %p198 = por %p196, %p197
      %s200 = sadd.s32 %s199, 1
      %p203 = scmp.eq.s32.totalorder %s34, 1
      %p204 = scmp.ne.s32.totalorder %s199, %s201
      %p205 = scmp.eq.s32.totalorder %s34, 0
      %p206 = por %p204, %p205
      %p207 = scmp.ne.s32.totalorder %s199, %s201
      %p208 = scmp.eq.s32.totalorder %s39, 1
      %p209 = por %p207, %p208
      %p210 = scmp.ne.s32.totalorder %s201, %s202
      %p211 = scmp.eq.s32.totalorder %s39, 0
      %p212 = por %p210, %p211
      %p213 = scmp.ne.s32.totalorder %s201, %s202
      %p214 = scmp.eq.s32.totalorder %s40, 1
      %p215 = por %p213, %p214
      %p217 = scmp.ne.s32.totalorder %s202, %s216
      %p218 = scmp.eq.s32.totalorder %s40, 0
      %p219 = por %p217, %p218
      %s221 = sadd.s32 %s220, 1
      %p224 = scmp.eq.s32.totalorder %s34, 1
      %p225 = scmp.ne.s32.totalorder %s220, %s222
      %p226 = scmp.eq.s32.totalorder %s34, 0
      %p227 = por %p225, %p226
      %p228 = scmp.ne.s32.totalorder %s220, %s222
      %p229 = scmp.eq.s32.totalorder %s39, 1
      %p230 = por %p228, %p229
      %p231 = scmp.ne.s32.totalorder %s222, %s223
      %p232 = scmp.eq.s32.totalorder %s39, 0
      %p233 = por %p231, %p232
      %p234 = scmp.ne.s32.totalorder %s222, %s223
      %p235 = scmp.eq.s32.totalorder %s40, 1
      %p236 = por %p234, %p235
      %p238 = scmp.ne.s32.totalorder %s223, %s237
      %p239 = scmp.eq.s32.totalorder %s40, 0
      %p240 = por %p238, %p239
      %s242 = sadd.s32 %s241, 1
      %p245 = scmp.eq.s32.totalorder %s34, 1
      %p246 = scmp.ne.s32.totalorder %s241, %s243
      %p247 = scmp.eq.s32.totalorder %s34, 0
      %p248 = por %p246, %p247
      %p249 = scmp.ne.s32.totalorder %s241, %s243
      %p250 = scmp.eq.s32.totalorder %s39, 1
      %p251 = por %p249, %p250
      %p252 = scmp.ne.s32.totalorder %s243, %s244
      %p253 = scmp.eq.s32.totalorder %s39, 0
      %p254 = por %p252, %p253
      %p255 = scmp.ne.s32.totalorder %s243, %s244
      %p256 = scmp.eq.s32.totalorder %s40, 1
      %p257 = por %p255, %p256
      %p259 = scmp.ne.s32.totalorder %s244, %s258
      %p260 = scmp.eq.s32.totalorder %s40, 0
      %p261 = por %p259, %p260
      %s263 = sadd.s32 %s262, 1
      %p266 = scmp.eq.s32.totalorder %s34, 1
      %p267 = scmp.ne.s32.totalorder %s262, %s264
      %p268 = scmp.eq.s32.totalorder %s34, 0
      %p269 = por %p267, %p268
      %p270 = scmp.ne.s32.totalorder %s262, %s264
      %p271 = scmp.eq.s32.totalorder %s39, 1
      %p272 = por %p270, %p271
      %p273 = scmp.ne.s32.totalorder %s264, %s265
      %p274 = scmp.eq.s32.totalorder %s39, 0
      %p275 = por %p273, %p274
      %p276 = scmp.ne.s32.totalorder %s264, %s265
      %p277 = scmp.eq.s32.totalorder %s40, 1
      %p278 = por %p276, %p277
      %p280 = scmp.ne.s32.totalorder %s265, %s279
      %p281 = scmp.eq.s32.totalorder %s40, 0
      %p282 = por %p280, %p281
      %s284 = sadd.s32 %s283, 1
      %p287 = scmp.eq.s32.totalorder %s34, 1
      %p288 = scmp.ne.s32.totalorder %s283, %s285
      %p289 = scmp.eq.s32.totalorder %s34, 0
      %p290 = por %p288, %p289
      %p291 = scmp.ne.s32.totalorder %s283, %s285
      %p292 = scmp.eq.s32.totalorder %s39, 1
      %p293 = por %p291, %p292
      %p294 = scmp.ne.s32.totalorder %s285, %s286
      %p295 = scmp.eq.s32.totalorder %s39, 0
      %p296 = por %p294, %p295
      %p297 = scmp.ne.s32.totalorder %s285, %s286
      %p298 = scmp.eq.s32.totalorder %s40, 1
      %p299 = por %p297, %p298
      %p301 = scmp.ne.s32.totalorder %s286, %s300
      %p302 = scmp.eq.s32.totalorder %s40, 0
      %p303 = por %p301, %p302
      %s305 = sadd.s32 %s304, 1
      %p308 = scmp.eq.s32.totalorder %s34, 1
      %p309 = scmp.ne.s32.totalorder %s304, %s306
      %p310 = scmp.eq.s32.totalorder %s34, 0
      %p311 = por %p309, %p310
      %p312 = scmp.ne.s32.totalorder %s304, %s306
      %p313 = scmp.eq.s32.totalorder %s39, 1
      %p314 = por %p312, %p313
      %p315 = scmp.ne.s32.totalorder %s306, %s307
      %p316 = scmp.eq.s32.totalorder %s39, 0
      %p317 = por %p315, %p316
      %p318 = scmp.ne.s32.totalorder %s306, %s307
      %p319 = scmp.eq.s32.totalorder %s40, 1
      %p320 = por %p318, %p319
      %p322 = scmp.ne.s32.totalorder %s307, %s321
      %p323 = scmp.eq.s32.totalorder %s40, 0
      %p324 = por %p322, %p323
      %s326 = sadd.s32 %s325, 1
      %p329 = scmp.eq.s32.totalorder %s34, 1
      %p330 = scmp.ne.s32.totalorder %s325, %s327
      %p331 = scmp.eq.s32.totalorder %s34, 0
      %p332 = por %p330, %p331
      %p333 = scmp.ne.s32.totalorder %s325, %s327
      %p334 = scmp.eq.s32.totalorder %s39, 1
      %p335 = por %p333, %p334
      %p336 = scmp.ne.s32.totalorder %s327, %s328
      %p337 = scmp.eq.s32.totalorder %s39, 0
      %p338 = por %p336, %p337
      %p339 = scmp.ne.s32.totalorder %s327, %s328
      %p340 = scmp.eq.s32.totalorder %s40, 1
      %p341 = por %p339, %p340
      %p343 = scmp.ne.s32.totalorder %s328, %s342
      %p344 = scmp.eq.s32.totalorder %s40, 0
      %p345 = por %p343, %p344
      %s347 = sadd.s32 %s346, 1
      %p350 = scmp.eq.s32.totalorder %s34, 1
      %p351 = scmp.ne.s32.totalorder %s346, %s348
      %p352 = scmp.eq.s32.totalorder %s34, 0
      %p353 = por %p351, %p352
      %p354 = scmp.ne.s32.totalorder %s346, %s348
      %p355 = scmp.eq.s32.totalorder %s39, 1
      %p356 = por %p354, %p355
      %p357 = scmp.ne.s32.totalorder %s348, %s349
      %p358 = scmp.eq.s32.totalorder %s39, 0
      %p359 = por %p357, %p358
      %p360 = scmp.ne.s32.totalorder %s348, %s349
      %p361 = scmp.eq.s32.totalorder %s40, 1
      %p362 = por %p360, %p361
      %p364 = scmp.ne.s32.totalorder %s349, %s363
      %p365 = scmp.eq.s32.totalorder %s40, 0
      %p366 = por %p364, %p365
      %s368 = sadd.s32 %s367, 1
      %p371 = scmp.eq.s32.totalorder %s34, 1
      %p372 = scmp.ne.s32.totalorder %s367, %s369
      %p373 = scmp.eq.s32.totalorder %s34, 0
      %p374 = por %p372, %p373
      %p375 = scmp.ne.s32.totalorder %s367, %s369
      %p376 = scmp.eq.s32.totalorder %s39, 1
      %p377 = por %p375, %p376
      %p378 = scmp.ne.s32.totalorder %s369, %s370
      %p379 = scmp.eq.s32.totalorder %s39, 0
      %p380 = por %p378, %p379
      %p381 = scmp.ne.s32.totalorder %s369, %s370
      %p382 = scmp.eq.s32.totalorder %s40, 1
      %p383 = por %p381, %p382
      %p385 = scmp.ne.s32.totalorder %s370, %s384
      %p386 = scmp.eq.s32.totalorder %s40, 0
      %p387 = por %p385, %p386
      %s388 = ssub.s32 %s34, %s41
      %p389 = scmp.eq.s32.totalorder %s388, 0
      %s391 = sadd.s32 %s390, 1
      %s392 = scalar_select %p389, %s390, %s391
      %p395 = pneg %p389
      %p396 = scmp.eq.s32.totalorder %s34, 1
      %p397 = por %p395, %p396
      %p398 = scmp.ne.s32.totalorder %s390, %s393
      %p399 = scmp.eq.s32.totalorder %s34, 0
      %p400 = por %p398, %p399
      %p401 = scmp.ne.s32.totalorder %s390, %s393
      %p402 = scmp.eq.s32.totalorder %s39, 1
      %p403 = por %p401, %p402
      %p404 = scmp.ne.s32.totalorder %s393, %s394
      %p405 = scmp.eq.s32.totalorder %s39, 0
      %p406 = por %p404, %p405
      %p407 = scmp.ne.s32.totalorder %s393, %s394
      %p408 = scmp.eq.s32.totalorder %s40, 1
      %p409 = por %p407, %p408
      %p411 = scmp.ne.s32.totalorder %s394, %s410
      %p412 = scmp.eq.s32.totalorder %s40, 0
      %p413 = por %p411, %p412
      %p414 = scmp.le.s32.totalorder 1, %s34
      %p415 = scmp.lt.s32.totalorder %s34, 3
      %p416 = pnand %p414, %p415
      %p417 = pneg %p416
      // Predicated region
      $region9: #{tpu_custom_call.1} parent=5 // pred_check
        _
      $region10: #{tpu_custom_call.1} parent=5 // pred_check_branch
        %419 = sbr.rel (%p416) target = $region12
      $region11: #{tpu_custom_call.1} parent=5 // pred_region
        %s420 = ssub.s32 %s34, 1
        // Predicated region
        $region13: #{tpu_custom_call.1} parent=11 // pred_check
          %p421 = pneg %p107
        $region14: #{tpu_custom_call.1} parent=11 // pred_check_branch
          %423 = sbr.rel (%p421) target = $region16
        $region15: #{tpu_custom_call.1} parent=11 // pred_region
          %425 = vsyncadd [#allocation6], 0
          %s426 = sshll.u32 %s2, 4
          %s427 = int_to_ptr.hbm [resolvable:$true] %s426
          %s428 = sshll.u32 [#allocation7], 4
          %s429 = int_to_ptr.vmem [resolvable:$true] %s428
          %434 = dma.hbm_to_vmem [thread:$0]  %s427, 1024, %s429, [#allocation6], 64, 64, 4
        $region16: #{tpu_custom_call.1} parent=11 // pred_fallthru
          _
        // Predicated region
        $region17: #{tpu_custom_call.1} parent=11 // pred_check
          %p435 = pneg %p128
        $region18: #{tpu_custom_call.1} parent=11 // pred_check_branch
          %437 = sbr.rel (%p435) target = $region20
        $region19: #{tpu_custom_call.1} parent=11 // pred_region
          _
        $region20: #{tpu_custom_call.1} parent=11 // pred_fallthru
          _
        // Predicated region
        $region21: #{tpu_custom_call.1} parent=11 // pred_check
          %p438 = pneg %p149
        $region22: #{tpu_custom_call.1} parent=11 // pred_check_branch
          %440 = sbr.rel (%p438) target = $region24
        $region23: #{tpu_custom_call.1} parent=11 // pred_region
          %442 = vsyncadd [#allocation9], 0
          %s443 = sshll.u32 %s4, 4
          %s444 = int_to_ptr.hbm [resolvable:$true] %s443
          %s445 = sshll.u32 [#allocation8], 4
          %s446 = int_to_ptr.vmem [resolvable:$true] %s445
          %451 = dma.hbm_to_vmem [thread:$0]  %s444, 1024, %s446, [#allocation9], 64, 64, 4
        $region24: #{tpu_custom_call.1} parent=11 // pred_fallthru
          _
        // Predicated region
        $region25: #{tpu_custom_call.1} parent=11 // pred_check
          %p452 = pneg %p170
        $region26: #{tpu_custom_call.1} parent=11 // pred_check_branch
          %454 = sbr.rel (%p452) target = $region28
        $region27: #{tpu_custom_call.1} parent=11 // pred_region
          _
        $region28: #{tpu_custom_call.1} parent=11 // pred_fallthru
          _
        // Predicated region
        $region29: #{tpu_custom_call.1} parent=11 // pred_check
          %p455 = pneg %p191
        $region30: #{tpu_custom_call.1} parent=11 // pred_check_branch
          %457 = sbr.rel (%p455) target = $region32
        $region31: #{tpu_custom_call.1} parent=11 // pred_region
          %459 = vsyncadd [#allocation9], 0
          %s460 = sshll.u32 %s6, 4
          %s461 = int_to_ptr.hbm [resolvable:$true] %s460
          %s462 = sshll.u32 [#allocation10], 4
          %s463 = int_to_ptr.vmem [resolvable:$true] %s462
          %468 = dma.hbm_to_vmem [thread:$0]  %s461, 1024, %s463, [#allocation9], 64, 64, 4
        $region32: #{tpu_custom_call.1} parent=11 // pred_fallthru
          _
        // Predicated region
        $region33: #{tpu_custom_call.1} parent=11 // pred_check
          %p469 = pneg %p212
        $region34: #{tpu_custom_call.1} parent=11 // pred_check_branch
          %471 = sbr.rel (%p469) target = $region36
        $region35: #{tpu_custom_call.1} parent=11 // pred_region
          _
        $region36: #{tpu_custom_call.1} parent=11 // pred_fallthru
          _
        // Predicated region
        $region37: #{tpu_custom_call.1} parent=11 // pred_check
          %p472 = pneg %p233
        $region38: #{tpu_custom_call.1} parent=11 // pred_check_branch
          %474 = sbr.rel (%p472) target = $region40
        $region39: #{tpu_custom_call.1} parent=11 // pred_region
          %476 = vsyncadd [#allocation12], 0
          %s477 = sshll.u32 %s8, 4
          %s478 = int_to_ptr.hbm [resolvable:$true] %s477
          %s479 = sshll.u32 [#allocation11], 4
          %s480 = int_to_ptr.vmem [resolvable:$true] %s479
          %485 = dma.hbm_to_vmem [thread:$0]  %s478, 1024, %s480, [#allocation12], 64, 64, 4
        $region40: #{tpu_custom_call.1} parent=11 // pred_fallthru
          _
        // Predicated region
        $region41: #{tpu_custom_call.1} parent=11 // pred_check
          %p486 = pneg %p254
        $region42: #{tpu_custom_call.1} parent=11 // pred_check_branch
          %488 = sbr.rel (%p486) target = $region44
        $region43: #{tpu_custom_call.1} parent=11 // pred_region
          _
        $region44: #{tpu_custom_call.1} parent=11 // pred_fallthru
          _
        // Predicated region
        $region45: #{tpu_custom_call.1} parent=11 // pred_check
          %p489 = pneg %p275
        $region46: #{tpu_custom_call.1} parent=11 // pred_check_branch
          %491 = sbr.rel (%p489) target = $region48
        $region47: #{tpu_custom_call.1} parent=11 // pred_region
          %493 = vsyncadd [#allocation12], 0
          %s494 = sshll.u32 %s10, 4
          %s495 = int_to_ptr.hbm [resolvable:$true] %s494
          %s496 = sshll.u32 [#allocation13], 4
          %s497 = int_to_ptr.vmem [resolvable:$true] %s496
          %502 = dma.hbm_to_vmem [thread:$0]  %s495, 1024, %s497, [#allocation12], 64, 64, 4
        $region48: #{tpu_custom_call.1} parent=11 // pred_fallthru
          _
        // Predicated region
        $region49: #{tpu_custom_call.1} parent=11 // pred_check
          %p503 = pneg %p296
        $region50: #{tpu_custom_call.1} parent=11 // pred_check_branch
          %505 = sbr.rel (%p503) target = $region52
        $region51: #{tpu_custom_call.1} parent=11 // pred_region
          _
        $region52: #{tpu_custom_call.1} parent=11 // pred_fallthru
          _
        // Predicated region
        $region53: #{tpu_custom_call.1} parent=11 // pred_check
          %p506 = pneg %p317
        $region54: #{tpu_custom_call.1} parent=11 // pred_check_branch
          %508 = sbr.rel (%p506) target = $region56
        $region55: #{tpu_custom_call.1} parent=11 // pred_region
          %510 = vsyncadd [#allocation15], 0
          %s511 = sshll.u32 %s12, 4
          %s512 = int_to_ptr.hbm [resolvable:$true] %s511
          %s513 = sshll.u32 [#allocation14], 4
          %s514 = int_to_ptr.vmem [resolvable:$true] %s513
          %519 = dma.hbm_to_vmem [thread:$0]  %s512, 1024, %s514, [#allocation15], 64, 64, 4
        $region56: #{tpu_custom_call.1} parent=11 // pred_fallthru
          _
        // Predicated region
        $region57: #{tpu_custom_call.1} parent=11 // pred_check
          %p520 = pneg %p338
        $region58: #{tpu_custom_call.1} parent=11 // pred_check_branch
          %522 = sbr.rel (%p520) target = $region60
        $region59: #{tpu_custom_call.1} parent=11 // pred_region
          _
        $region60: #{tpu_custom_call.1} parent=11 // pred_fallthru
          _
        // Predicated region
        $region61: #{tpu_custom_call.1} parent=11 // pred_check
          %p523 = pneg %p359
        $region62: #{tpu_custom_call.1} parent=11 // pred_check_branch
          %525 = sbr.rel (%p523) target = $region64
        $region63: #{tpu_custom_call.1} parent=11 // pred_region
          %527 = vsyncadd [#allocation15], 0
          %s528 = sshll.u32 %s14, 4
          %s529 = int_to_ptr.hbm [resolvable:$true] %s528
          %s530 = sshll.u32 [#allocation16], 4
          %s531 = int_to_ptr.vmem [resolvable:$true] %s530
          %536 = dma.hbm_to_vmem [thread:$0]  %s529, 1024, %s531, [#allocation15], 64, 64, 4
        $region64: #{tpu_custom_call.1} parent=11 // pred_fallthru
          _
        // Predicated region
        $region65: #{tpu_custom_call.1} parent=11 // pred_check
          %p537 = pneg %p380
        $region66: #{tpu_custom_call.1} parent=11 // pred_check_branch
          %539 = sbr.rel (%p537) target = $region68
        $region67: #{tpu_custom_call.1} parent=11 // pred_region
          _
        $region68: #{tpu_custom_call.1} parent=11 // pred_fallthru
          _
      $region12: #{tpu_custom_call.1} parent=5 // pred_fallthru
        _
      %p540 = scmp.lt.s32.totalorder %s34, 2
      // Predicated region
      $region69: #{tpu_custom_call.1} parent=5 // pred_check
        %p541 = pneg %p540
      $region70: #{tpu_custom_call.1} parent=5 // pred_check_branch
        %543 = sbr.rel (%p541) target = $region72
      $region71: #{tpu_custom_call.1} parent=5 // pred_region
        // Predicated region
        $region73: #{tpu_custom_call.1} parent=71 // pred_check
          %p544 = pneg %p54
        $region74: #{tpu_custom_call.1} parent=71 // pred_check_branch
          %546 = sbr.rel (%p544) target = $region76
        $region75: #{tpu_custom_call.1} parent=71 // pred_region
          %s547 = sand.u32 %s44, 1
          %s548 = scalar_lea.sflag [#allocation3], %s547
          %s549 = sand.u32 %s44, 1
          %s550 = smul.addr %s549, 128
          %s551 = scalar_lea.vmem [#allocation2], %s550
          %s552 = smul.u32 16, %s34
          %554 = vsyncadd %s548, 0
          %s555 = smul.addr %s552, 8
          %s556 = scalar_lea.hbm %s0, %s555
          %s557 = sshll.u32 %s556, 4
          %s558 = int_to_ptr.hbm [resolvable:$true] %s557
          %s559 = sshll.u32 %s551, 4
          %s560 = int_to_ptr.vmem [resolvable:$true] %s559
          %565 = dma.hbm_to_vmem [thread:$0]  %s558, 2048, %s560, %s548, 128, 128, 8
        $region76: #{tpu_custom_call.1} parent=71 // pred_fallthru
          _
        // Predicated region
        $region77: #{tpu_custom_call.1} parent=71 // pred_check
          %p566 = pneg %p80
        $region78: #{tpu_custom_call.1} parent=71 // pred_check_branch
          %568 = sbr.rel (%p566) target = $region80
        $region79: #{tpu_custom_call.1} parent=71 // pred_region
          %s569 = sand.u32 %s34, 1
          %s570 = scalar_lea.sflag [#allocation6], %s569
          %s571 = sand.u32 %s70, 1
          %s572 = smul.addr %s571, 128
          %s573 = scalar_lea.vmem [#allocation5], %s572
          %s574 = smul.u32 16, %s34
          %576 = vsyncadd %s570, 0
          %s577 = smul.addr %s574, 8
          %s578 = scalar_lea.hbm %s1, %s577
          %s579 = sshll.u32 %s578, 4
          %s580 = int_to_ptr.hbm [resolvable:$true] %s579
          %s581 = sshll.u32 %s573, 4
          %s582 = int_to_ptr.vmem [resolvable:$true] %s581
          %587 = dma.hbm_to_vmem [thread:$0]  %s580, 2048, %s582, %s570, 128, 128, 8
        $region80: #{tpu_custom_call.1} parent=71 // pred_fallthru
          _
      $region72: #{tpu_custom_call.1} parent=5 // pred_fallthru
        _
      %p588 = scmp.le.s32.totalorder 1, %s34
      %p589 = scmp.lt.s32.totalorder %s34, 3
      %p590 = pnand %p588, %p589
      %p591 = pneg %p590
      // Predicated region
      $region81: #{tpu_custom_call.1} parent=5 // pred_check
        _
      $region82: #{tpu_custom_call.1} parent=5 // pred_check_branch
        %593 = sbr.rel (%p590) target = $region84
      $region83: #{tpu_custom_call.1} parent=5 // pred_region
        %s594 = ssub.s32 %s34, 1
        %s595 = sand.u32 %s47, 1
        %s596 = scalar_lea.sflag [#allocation3], %s595
        %s597 = sand.u32 %s47, 1
        %s598 = smul.addr %s597, 128
        %s599 = scalar_lea.vmem [#allocation2], %s598
        // Predicated region
        $region85: #{tpu_custom_call.1} parent=83 // pred_check
          %p600 = pneg %p60
        $region86: #{tpu_custom_call.1} parent=83 // pred_check_branch
          %602 = sbr.rel (%p600) target = $region88
        $region87: #{tpu_custom_call.1} parent=83 // pred_region
          %604 = dma.done %s596, 2048
        $region88: #{tpu_custom_call.1} parent=83 // pred_fallthru
          _
        %s605 = sand.u32 %s39, 1
        %s606 = scalar_lea.sflag [#allocation6], %s605
        %s607 = sand.u32 %s73, 1
        %s608 = smul.addr %s607, 128
        %s609 = scalar_lea.vmem [#allocation5], %s608
        // Predicated region
        $region89: #{tpu_custom_call.1} parent=83 // pred_check
          %p610 = pneg %p86
        $region90: #{tpu_custom_call.1} parent=83 // pred_check_branch
          %612 = sbr.rel (%p610) target = $region92
        $region91: #{tpu_custom_call.1} parent=83 // pred_region
          %614 = dma.done %s606, 2048
        $region92: #{tpu_custom_call.1} parent=83 // pred_fallthru
          _
        // Predicated region
        $region93: #{tpu_custom_call.1} parent=83 // pred_check
          %p615 = pneg %p107
        $region94: #{tpu_custom_call.1} parent=83 // pred_check_branch
          %617 = sbr.rel (%p615) target = $region96
        $region95: #{tpu_custom_call.1} parent=83 // pred_region
          %619 = dma.done [#allocation6], 1024
        $region96: #{tpu_custom_call.1} parent=83 // pred_fallthru
          _
        // Predicated region
        $region97: #{tpu_custom_call.1} parent=83 // pred_check
          %p620 = pneg %p149
        $region98: #{tpu_custom_call.1} parent=83 // pred_check_branch
          %622 = sbr.rel (%p620) target = $region100
        $region99: #{tpu_custom_call.1} parent=83 // pred_region
          %624 = dma.done [#allocation9], 1024
        $region100: #{tpu_custom_call.1} parent=83 // pred_fallthru
          _
        // Predicated region
        $region101: #{tpu_custom_call.1} parent=83 // pred_check
          %p625 = pneg %p191
        $region102: #{tpu_custom_call.1} parent=83 // pred_check_branch
          %627 = sbr.rel (%p625) target = $region104
        $region103: #{tpu_custom_call.1} parent=83 // pred_region
          %629 = dma.done [#allocation9], 1024
        $region104: #{tpu_custom_call.1} parent=83 // pred_fallthru
          _
        // Predicated region
        $region105: #{tpu_custom_call.1} parent=83 // pred_check
          %p630 = pneg %p233
        $region106: #{tpu_custom_call.1} parent=83 // pred_check_branch
          %632 = sbr.rel (%p630) target = $region108
        $region107: #{tpu_custom_call.1} parent=83 // pred_region
          %634 = dma.done [#allocation12], 1024
        $region108: #{tpu_custom_call.1} parent=83 // pred_fallthru
          _
        // Predicated region
        $region109: #{tpu_custom_call.1} parent=83 // pred_check
          %p635 = pneg %p275
        $region110: #{tpu_custom_call.1} parent=83 // pred_check_branch
          %637 = sbr.rel (%p635) target = $region112
        $region111: #{tpu_custom_call.1} parent=83 // pred_region
          %639 = dma.done [#allocation12], 1024
        $region112: #{tpu_custom_call.1} parent=83 // pred_fallthru
          _
        // Predicated region
        $region113: #{tpu_custom_call.1} parent=83 // pred_check
          %p640 = pneg %p317
        $region114: #{tpu_custom_call.1} parent=83 // pred_check_branch
          %642 = sbr.rel (%p640) target = $region116
        $region115: #{tpu_custom_call.1} parent=83 // pred_region
          %644 = dma.done [#allocation15], 1024
        $region116: #{tpu_custom_call.1} parent=83 // pred_fallthru
          _
        // Predicated region
        $region117: #{tpu_custom_call.1} parent=83 // pred_check
          %p645 = pneg %p359
        $region118: #{tpu_custom_call.1} parent=83 // pred_check_branch
          %647 = sbr.rel (%p645) target = $region120
        $region119: #{tpu_custom_call.1} parent=83 // pred_region
          %649 = dma.done [#allocation15], 1024
        $region120: #{tpu_custom_call.1} parent=83 // pred_fallthru
          _
        %s650 = sand.u32 %s47, 1
        %s651 = scalar_lea.sflag [#allocation3], %s650
        %s652 = sand.u32 %s47, 1
        %s653 = smul.addr %s652, 128
        %s654 = scalar_lea.vmem [#allocation2], %s653
        %p655 = pneg %p60
        %p656 = pneg %p57
        %s657 = sand.u32 %s39, 1
        %s658 = scalar_lea.sflag [#allocation6], %s657
        %s659 = sand.u32 %s73, 1
        %s660 = smul.addr %s659, 128
        %s661 = scalar_lea.vmem [#allocation5], %s660
        %p662 = pneg %p86
        %p663 = pneg %p83
        %p664 = pneg %p107
        %p665 = pneg %p104
        %p666 = pneg %p128
        %p667 = pneg %p125
        %p668 = pneg %p149
        %p669 = pneg %p146
        %p670 = pneg %p170
        %p671 = pneg %p167
        %p672 = pneg %p191
        %p673 = pneg %p188
        %p674 = pneg %p212
        %p675 = pneg %p209
        %p676 = pneg %p233
        %p677 = pneg %p230
        %p678 = pneg %p254
        %p679 = pneg %p251
        %p680 = pneg %p275
        %p681 = pneg %p272
        %p682 = pneg %p296
        %p683 = pneg %p293
        %p684 = pneg %p317
        %p685 = pneg %p314
        %p686 = pneg %p338
        %p687 = pneg %p335
        %p688 = pneg %p359
        %p689 = pneg %p356
        %p690 = pneg %p380
        %p691 = pneg %p377
        %p692 = pneg %p406
        %p693 = pneg %p403
        %s694 = sand.u32 %s393, 1
        %s695 = scalar_lea.sflag [#allocation4], %s694
        %s696 = sand.u32 %s393, 1
        %s697 = smul.addr %s696, 128
        %s698 = scalar_lea.vmem [#allocation17], %s697
        %s699 = smul.u32 16, %s39
        %s700 = smul.u32 16, %s39
        %s701 = smul.u32 16, %s39
        %v702 = vld [vmem:[%s599] sm:$0xff]
        %v703 = vld [vmem:[%s599 + $0x8] sm:$0xff]
        %v704 = vld [vmem:[%s599 + $0x10] sm:$0xff]
        %v705 = vld [vmem:[%s599 + $0x18] sm:$0xff]
        %v706 = vld [vmem:[%s599 + $0x20] sm:$0xff]
        %v707 = vld [vmem:[%s599 + $0x28] sm:$0xff]
        %v708 = vld [vmem:[%s599 + $0x30] sm:$0xff]
        %v709 = vld [vmem:[%s599 + $0x38] sm:$0xff]
        %v710 = vld [vmem:[%s599 + $0x40] sm:$0xff]
        %v711 = vld [vmem:[%s599 + $0x48] sm:$0xff]
        %v712 = vld [vmem:[%s599 + $0x50] sm:$0xff]
        %v713 = vld [vmem:[%s599 + $0x58] sm:$0xff]
        %v714 = vld [vmem:[%s599 + $0x60] sm:$0xff]
        %v715 = vld [vmem:[%s599 + $0x68] sm:$0xff]
        %v716 = vld [vmem:[%s599 + $0x70] sm:$0xff]
        %v717 = vld [vmem:[%s599 + $0x78] sm:$0xff]
        %v718 = vpack.c.bf16 %v703, %v702
        %v719 = vpack.c.bf16 %v705, %v704
        %v720 = vpack.c.bf16 %v707, %v706
        %v721 = vpack.c.bf16 %v709, %v708
        %v722 = vpack.c.bf16 %v711, %v710
        %v723 = vpack.c.bf16 %v713, %v712
        %v724 = vpack.c.bf16 %v715, %v714
        %v725 = vpack.c.bf16 %v717, %v716
        %v726 = vld [vmem:[#allocation7] sm:$0xf]
        %v727 = vld [vmem:[#allocation7 + $0x4] sm:$0xf]
        %v728 = vld [vmem:[#allocation7 + $0x8] sm:$0xf]
        %v729 = vld [vmem:[#allocation7 + $0xc] sm:$0xf]
        %v730 = vld [vmem:[#allocation7 + $0x10] sm:$0xf]
        %v731 = vld [vmem:[#allocation7 + $0x14] sm:$0xf]
        %v732 = vld [vmem:[#allocation7 + $0x18] sm:$0xf]
        %v733 = vld [vmem:[#allocation7 + $0x1c] sm:$0xf]
        %v734 = vld [vmem:[#allocation7 + $0x20] sm:$0xf]
        %v735 = vld [vmem:[#allocation7 + $0x24] sm:$0xf]
        %v736 = vld [vmem:[#allocation7 + $0x28] sm:$0xf]
        %v737 = vld [vmem:[#allocation7 + $0x2c] sm:$0xf]
        %v738 = vld [vmem:[#allocation7 + $0x30] sm:$0xf]
        %v739 = vld [vmem:[#allocation7 + $0x34] sm:$0xf]
        %v740 = vld [vmem:[#allocation7 + $0x38] sm:$0xf]
        %v741 = vld [vmem:[#allocation7 + $0x3c] sm:$0xf]
        %v742 = vld [vmem:[%s3] sm:$0x1]
        %v744 = vperm.slane %v742, 0
        %v762 = vunpack.c.l.b16 %v726
        %v763 = vunpack.c.l.b16 %v727
        %v764 = vunpack.c.l.b16 %v728
        %v765 = vunpack.c.l.b16 %v729
        %v766 = vunpack.c.l.b16 %v730
        %v767 = vunpack.c.l.b16 %v731
        %v768 = vunpack.c.l.b16 %v732
        %v769 = vunpack.c.l.b16 %v733
        %v770 = vunpack.c.l.b16 %v734
        %v771 = vunpack.c.l.b16 %v735
        %v772 = vunpack.c.l.b16 %v736
        %v773 = vunpack.c.l.b16 %v737
        %v774 = vunpack.c.l.b16 %v738
        %v775 = vunpack.c.l.b16 %v739
        %v776 = vunpack.c.l.b16 %v740
        %v777 = vunpack.c.l.b16 %v741
        %v778 = vpack.c.b16 %v763, %v762
        %v779 = vpack.c.b16 %v765, %v764
        %v780 = vpack.c.b16 %v767, %v766
        %v781 = vpack.c.b16 %v769, %v768
        %v782 = vpack.c.b16 %v771, %v770
        %v783 = vpack.c.b16 %v773, %v772
        %v784 = vpack.c.b16 %v775, %v774
        %v785 = vpack.c.b16 %v777, %v776
        %794 = vmatpush.bf16.msra.mxu0 %v785
        %795 = vmatpush.bf16.msra.mxu0 %v784
        %796 = vmatpush.bf16.msra.mxu0 %v783
        %797 = vmatpush.bf16.msra.mxu0 %v782
        %798 = vmatpush.bf16.msra.mxu0 %v781
        %799 = vmatpush.bf16.msra.mxu0 %v780
        %800 = vmatpush.bf16.msra.mxu0 %v779
        %801 = vmatpush.bf16.msra.mxu0 %v778
        %802 = vmatmul.bf16.gmra.mxu0 %v718
        %v803 = vpop.f32.mrf.mxu0
        %v804 = vadd.f32 %v744, %v803
        %v805 = vpop.f32.mrf.mxu0
        %v806 = vadd.f32 %v744, %v805
        %807 = vmatmul.bf16.gmra.mxu0 %v719
        %v808 = vpop.f32.mrf.mxu0
        %v809 = vadd.f32 %v744, %v808
        %v810 = vpop.f32.mrf.mxu0
        %v811 = vadd.f32 %v744, %v810
        %812 = vmatmul.bf16.gmra.mxu0 %v720
        %v813 = vpop.f32.mrf.mxu0
        %v814 = vadd.f32 %v744, %v813
        %v815 = vpop.f32.mrf.mxu0
        %v816 = vadd.f32 %v744, %v815
        %817 = vmatmul.bf16.gmra.mxu0 %v721
        %v818 = vpop.f32.mrf.mxu0
        %v819 = vadd.f32 %v744, %v818
        %v820 = vpop.f32.mrf.mxu0
        %v821 = vadd.f32 %v744, %v820
        %822 = vmatmul.bf16.gmra.mxu0 %v722
        %v823 = vpop.f32.mrf.mxu0
        %v824 = vadd.f32 %v744, %v823
        %v825 = vpop.f32.mrf.mxu0
        %v826 = vadd.f32 %v744, %v825
        %827 = vmatmul.bf16.gmra.mxu0 %v723
        %v828 = vpop.f32.mrf.mxu0
        %v829 = vadd.f32 %v744, %v828
        %v830 = vpop.f32.mrf.mxu0
        %v831 = vadd.f32 %v744, %v830
        %832 = vmatmul.bf16.gmra.mxu0 %v724
        %v833 = vpop.f32.mrf.mxu0
        %v834 = vadd.f32 %v744, %v833
        %v835 = vpop.f32.mrf.mxu0
        %v836 = vadd.f32 %v744, %v835
        %837 = vmatmul.bf16.gmra.mxu0 %v725
        %v838 = vpop.f32.mrf.mxu0
        %v839 = vadd.f32 %v744, %v838
        %v840 = vpop.f32.mrf.mxu0
        %v841 = vadd.f32 %v744, %v840
        %842 = vdwg.mxu0
        %v843 = vmax.f32 %v804, 0.0
        %v844 = vmax.f32 %v806, 0.0
        %v845 = vmax.f32 %v809, 0.0
        %v846 = vmax.f32 %v811, 0.0
        %v847 = vmax.f32 %v814, 0.0
        %v848 = vmax.f32 %v816, 0.0
        %v849 = vmax.f32 %v819, 0.0
        %v850 = vmax.f32 %v821, 0.0
        %v851 = vmax.f32 %v824, 0.0
        %v852 = vmax.f32 %v826, 0.0
        %v853 = vmax.f32 %v829, 0.0
        %v854 = vmax.f32 %v831, 0.0
        %v855 = vmax.f32 %v834, 0.0
        %v856 = vmax.f32 %v836, 0.0
        %v857 = vmax.f32 %v839, 0.0
        %v858 = vmax.f32 %v841, 0.0
        %v859 = vpack.c.bf16 %v844, %v843
        %v860 = vpack.c.bf16 %v846, %v845
        %v861 = vpack.c.bf16 %v848, %v847
        %v862 = vpack.c.bf16 %v850, %v849
        %v863 = vpack.c.bf16 %v852, %v851
        %v864 = vpack.c.bf16 %v854, %v853
        %v865 = vpack.c.bf16 %v856, %v855
        %v866 = vpack.c.bf16 %v858, %v857
        %v867 = vld [vmem:[#allocation8] sm:$0xf]
        %v868 = vld [vmem:[#allocation8 + $0x4] sm:$0xf]
        %v869 = vld [vmem:[#allocation8 + $0x8] sm:$0xf]
        %v870 = vld [vmem:[#allocation8 + $0xc] sm:$0xf]
        %v871 = vld [vmem:[#allocation8 + $0x10] sm:$0xf]
        %v872 = vld [vmem:[#allocation8 + $0x14] sm:$0xf]
        %v873 = vld [vmem:[#allocation8 + $0x18] sm:$0xf]
        %v874 = vld [vmem:[#allocation8 + $0x1c] sm:$0xf]
        %v875 = vld [vmem:[#allocation8 + $0x20] sm:$0xf]
        %v876 = vld [vmem:[#allocation8 + $0x24] sm:$0xf]
        %v877 = vld [vmem:[#allocation8 + $0x28] sm:$0xf]
        %v878 = vld [vmem:[#allocation8 + $0x2c] sm:$0xf]
        %v879 = vld [vmem:[#allocation8 + $0x30] sm:$0xf]
        %v880 = vld [vmem:[#allocation8 + $0x34] sm:$0xf]
        %v881 = vld [vmem:[#allocation8 + $0x38] sm:$0xf]
        %v882 = vld [vmem:[#allocation8 + $0x3c] sm:$0xf]
        %v883 = vld [vmem:[%s5] sm:$0x1]
        %v885 = vperm.slane %v883, 0
        %v903 = vunpack.c.l.b16 %v867
        %v904 = vunpack.c.l.b16 %v868
        %v905 = vunpack.c.l.b16 %v869
        %v906 = vunpack.c.l.b16 %v870
        %v907 = vunpack.c.l.b16 %v871
        %v908 = vunpack.c.l.b16 %v872
        %v909 = vunpack.c.l.b16 %v873
        %v910 = vunpack.c.l.b16 %v874
        %v911 = vunpack.c.l.b16 %v875
        %v912 = vunpack.c.l.b16 %v876
        %v913 = vunpack.c.l.b16 %v877
        %v914 = vunpack.c.l.b16 %v878
        %v915 = vunpack.c.l.b16 %v879
        %v916 = vunpack.c.l.b16 %v880
        %v917 = vunpack.c.l.b16 %v881
        %v918 = vunpack.c.l.b16 %v882
        %v919 = vpack.c.b16 %v904, %v903
        %v920 = vpack.c.b16 %v906, %v905
        %v921 = vpack.c.b16 %v908, %v907
        %v922 = vpack.c.b16 %v910, %v909
        %v923 = vpack.c.b16 %v912, %v911
        %v924 = vpack.c.b16 %v914, %v913
        %v925 = vpack.c.b16 %v916, %v915
        %v926 = vpack.c.b16 %v918, %v917
        %935 = vmatpush.bf16.msra.mxu0 %v926
        %936 = vmatpush.bf16.msra.mxu0 %v925
        %937 = vmatpush.bf16.msra.mxu0 %v924
        %938 = vmatpush.bf16.msra.mxu0 %v923
        %939 = vmatpush.bf16.msra.mxu0 %v922
        %940 = vmatpush.bf16.msra.mxu0 %v921
        %941 = vmatpush.bf16.msra.mxu0 %v920
        %942 = vmatpush.bf16.msra.mxu0 %v919
        %943 = vmatmul.bf16.gmra.mxu0 %v859
        %v944 = vpop.f32.mrf.mxu0
        %v945 = vadd.f32 %v885, %v944
        %v946 = vpop.f32.mrf.mxu0
        %v947 = vadd.f32 %v885, %v946
        %948 = vmatmul.bf16.gmra.mxu0 %v860
        %v949 = vpop.f32.mrf.mxu0
        %v950 = vadd.f32 %v885, %v949
        %v951 = vpop.f32.mrf.mxu0
        %v952 = vadd.f32 %v885, %v951
        %953 = vmatmul.bf16.gmra.mxu0 %v861
        %v954 = vpop.f32.mrf.mxu0
        %v955 = vadd.f32 %v885, %v954
        %v956 = vpop.f32.mrf.mxu0
        %v957 = vadd.f32 %v885, %v956
        %958 = vmatmul.bf16.gmra.mxu0 %v862
        %v959 = vpop.f32.mrf.mxu0
        %v960 = vadd.f32 %v885, %v959
        %v961 = vpop.f32.mrf.mxu0
        %v962 = vadd.f32 %v885, %v961
        %963 = vmatmul.bf16.gmra.mxu0 %v863
        %v964 = vpop.f32.mrf.mxu0
        %v965 = vadd.f32 %v885, %v964
        %v966 = vpop.f32.mrf.mxu0
        %v967 = vadd.f32 %v885, %v966
        %968 = vmatmul.bf16.gmra.mxu0 %v864
        %v969 = vpop.f32.mrf.mxu0
        %v970 = vadd.f32 %v885, %v969
        %v971 = vpop.f32.mrf.mxu0
        %v972 = vadd.f32 %v885, %v971
        %973 = vmatmul.bf16.gmra.mxu0 %v865
        %v974 = vpop.f32.mrf.mxu0
        %v975 = vadd.f32 %v885, %v974
        %v976 = vpop.f32.mrf.mxu0
        %v977 = vadd.f32 %v885, %v976
        %978 = vmatmul.bf16.gmra.mxu0 %v866
        %v979 = vpop.f32.mrf.mxu0
        %v980 = vadd.f32 %v885, %v979
        %v981 = vpop.f32.mrf.mxu0
        %v982 = vadd.f32 %v885, %v981
        %983 = vdwg.mxu0
        %v984 = vmax.f32 %v945, 0.0
        %v985 = vmax.f32 %v947, 0.0
        %v986 = vmax.f32 %v950, 0.0
        %v987 = vmax.f32 %v952, 0.0
        %v988 = vmax.f32 %v955, 0.0
        %v989 = vmax.f32 %v957, 0.0
        %v990 = vmax.f32 %v960, 0.0
        %v991 = vmax.f32 %v962, 0.0
        %v992 = vmax.f32 %v965, 0.0
        %v993 = vmax.f32 %v967, 0.0
        %v994 = vmax.f32 %v970, 0.0
        %v995 = vmax.f32 %v972, 0.0
        %v996 = vmax.f32 %v975, 0.0
        %v997 = vmax.f32 %v977, 0.0
        %v998 = vmax.f32 %v980, 0.0
        %v999 = vmax.f32 %v982, 0.0
        %v1000 = vpack.c.bf16 %v985, %v984
        %v1001 = vpack.c.bf16 %v987, %v986
        %v1002 = vpack.c.bf16 %v989, %v988
        %v1003 = vpack.c.bf16 %v991, %v990
        %v1004 = vpack.c.bf16 %v993, %v992
        %v1005 = vpack.c.bf16 %v995, %v994
        %v1006 = vpack.c.bf16 %v997, %v996
        %v1007 = vpack.c.bf16 %v999, %v998
        %v1008 = vld [vmem:[#allocation10] sm:$0xf]
        %v1009 = vld [vmem:[#allocation10 + $0x4] sm:$0xf]
        %v1010 = vld [vmem:[#allocation10 + $0x8] sm:$0xf]
        %v1011 = vld [vmem:[#allocation10 + $0xc] sm:$0xf]
        %v1012 = vld [vmem:[#allocation10 + $0x10] sm:$0xf]
        %v1013 = vld [vmem:[#allocation10 + $0x14] sm:$0xf]
        %v1014 = vld [vmem:[#allocation10 + $0x18] sm:$0xf]
        %v1015 = vld [vmem:[#allocation10 + $0x1c] sm:$0xf]
        %v1016 = vld [vmem:[#allocation10 + $0x20] sm:$0xf]
        %v1017 = vld [vmem:[#allocation10 + $0x24] sm:$0xf]
        %v1018 = vld [vmem:[#allocation10 + $0x28] sm:$0xf]
        %v1019 = vld [vmem:[#allocation10 + $0x2c] sm:$0xf]
        %v1020 = vld [vmem:[#allocation10 + $0x30] sm:$0xf]
        %v1021 = vld [vmem:[#allocation10 + $0x34] sm:$0xf]
        %v1022 = vld [vmem:[#allocation10 + $0x38] sm:$0xf]
        %v1023 = vld [vmem:[#allocation10 + $0x3c] sm:$0xf]
        %v1024 = vld [vmem:[%s7] sm:$0x1]
        %v1026 = vperm.slane %v1024, 0
        %v1044 = vunpack.c.l.b16 %v1008
        %v1045 = vunpack.c.l.b16 %v1009
        %v1046 = vunpack.c.l.b16 %v1010
        %v1047 = vunpack.c.l.b16 %v1011
        %v1048 = vunpack.c.l.b16 %v1012
        %v1049 = vunpack.c.l.b16 %v1013
        %v1050 = vunpack.c.l.b16 %v1014
        %v1051 = vunpack.c.l.b16 %v1015
        %v1052 = vunpack.c.l.b16 %v1016
        %v1053 = vunpack.c.l.b16 %v1017
        %v1054 = vunpack.c.l.b16 %v1018
        %v1055 = vunpack.c.l.b16 %v1019
        %v1056 = vunpack.c.l.b16 %v1020
        %v1057 = vunpack.c.l.b16 %v1021
        %v1058 = vunpack.c.l.b16 %v1022
        %v1059 = vunpack.c.l.b16 %v1023
        %v1060 = vpack.c.b16 %v1045, %v1044
        %v1061 = vpack.c.b16 %v1047, %v1046
        %v1062 = vpack.c.b16 %v1049, %v1048
        %v1063 = vpack.c.b16 %v1051, %v1050
        %v1064 = vpack.c.b16 %v1053, %v1052
        %v1065 = vpack.c.b16 %v1055, %v1054
        %v1066 = vpack.c.b16 %v1057, %v1056
        %v1067 = vpack.c.b16 %v1059, %v1058
        %1076 = vmatpush.bf16.msra.mxu0 %v1067
        %1077 = vmatpush.bf16.msra.mxu0 %v1066
        %1078 = vmatpush.bf16.msra.mxu0 %v1065
        %1079 = vmatpush.bf16.msra.mxu0 %v1064
        %1080 = vmatpush.bf16.msra.mxu0 %v1063
        %1081 = vmatpush.bf16.msra.mxu0 %v1062
        %1082 = vmatpush.bf16.msra.mxu0 %v1061
        %1083 = vmatpush.bf16.msra.mxu0 %v1060
        %1084 = vmatmul.bf16.gmra.mxu0 %v1000
        %v1085 = vpop.f32.mrf.mxu0
        %v1086 = vadd.f32 %v1026, %v1085
        %v1087 = vpop.f32.mrf.mxu0
        %v1088 = vadd.f32 %v1026, %v1087
        %1089 = vmatmul.bf16.gmra.mxu0 %v1001
        %v1090 = vpop.f32.mrf.mxu0
        %v1091 = vadd.f32 %v1026, %v1090
        %v1092 = vpop.f32.mrf.mxu0
        %v1093 = vadd.f32 %v1026, %v1092
        %1094 = vmatmul.bf16.gmra.mxu0 %v1002
        %v1095 = vpop.f32.mrf.mxu0
        %v1096 = vadd.f32 %v1026, %v1095
        %v1097 = vpop.f32.mrf.mxu0
        %v1098 = vadd.f32 %v1026, %v1097
        %1099 = vmatmul.bf16.gmra.mxu0 %v1003
        %v1100 = vpop.f32.mrf.mxu0
        %v1101 = vadd.f32 %v1026, %v1100
        %v1102 = vpop.f32.mrf.mxu0
        %v1103 = vadd.f32 %v1026, %v1102
        %1104 = vmatmul.bf16.gmra.mxu0 %v1004
        %v1105 = vpop.f32.mrf.mxu0
        %v1106 = vadd.f32 %v1026, %v1105
        %v1107 = vpop.f32.mrf.mxu0
        %v1108 = vadd.f32 %v1026, %v1107
        %1109 = vmatmul.bf16.gmra.mxu0 %v1005
        %v1110 = vpop.f32.mrf.mxu0
        %v1111 = vadd.f32 %v1026, %v1110
        %v1112 = vpop.f32.mrf.mxu0
        %v1113 = vadd.f32 %v1026, %v1112
        %1114 = vmatmul.bf16.gmra.mxu0 %v1006
        %v1115 = vpop.f32.mrf.mxu0
        %v1116 = vadd.f32 %v1026, %v1115
        %v1117 = vpop.f32.mrf.mxu0
        %v1118 = vadd.f32 %v1026, %v1117
        %1119 = vmatmul.bf16.gmra.mxu0 %v1007
        %v1120 = vpop.f32.mrf.mxu0
        %v1121 = vadd.f32 %v1026, %v1120
        %v1122 = vpop.f32.mrf.mxu0
        %v1123 = vadd.f32 %v1026, %v1122
        %1124 = vdwg.mxu0
        %v1125 = vld [vmem:[#allocation11] sm:$0xf]
        %v1126 = vld [vmem:[#allocation11 + $0x4] sm:$0xf]
        %v1127 = vld [vmem:[#allocation11 + $0x8] sm:$0xf]
        %v1128 = vld [vmem:[#allocation11 + $0xc] sm:$0xf]
        %v1129 = vld [vmem:[#allocation11 + $0x10] sm:$0xf]
        %v1130 = vld [vmem:[#allocation11 + $0x14] sm:$0xf]
        %v1131 = vld [vmem:[#allocation11 + $0x18] sm:$0xf]
        %v1132 = vld [vmem:[#allocation11 + $0x1c] sm:$0xf]
        %v1133 = vld [vmem:[#allocation11 + $0x20] sm:$0xf]
        %v1134 = vld [vmem:[#allocation11 + $0x24] sm:$0xf]
        %v1135 = vld [vmem:[#allocation11 + $0x28] sm:$0xf]
        %v1136 = vld [vmem:[#allocation11 + $0x2c] sm:$0xf]
        %v1137 = vld [vmem:[#allocation11 + $0x30] sm:$0xf]
        %v1138 = vld [vmem:[#allocation11 + $0x34] sm:$0xf]
        %v1139 = vld [vmem:[#allocation11 + $0x38] sm:$0xf]
        %v1140 = vld [vmem:[#allocation11 + $0x3c] sm:$0xf]
        %v1141 = vld [vmem:[%s9] sm:$0x1]
        %v1143 = vperm.slane %v1141, 0
        %v1161 = vunpack.c.l.b16 %v1125
        %v1162 = vunpack.c.l.b16 %v1126
        %v1163 = vunpack.c.l.b16 %v1127
        %v1164 = vunpack.c.l.b16 %v1128
        %v1165 = vunpack.c.l.b16 %v1129
        %v1166 = vunpack.c.l.b16 %v1130
        %v1167 = vunpack.c.l.b16 %v1131
        %v1168 = vunpack.c.l.b16 %v1132
        %v1169 = vunpack.c.l.b16 %v1133
        %v1170 = vunpack.c.l.b16 %v1134
        %v1171 = vunpack.c.l.b16 %v1135
        %v1172 = vunpack.c.l.b16 %v1136
        %v1173 = vunpack.c.l.b16 %v1137
        %v1174 = vunpack.c.l.b16 %v1138
        %v1175 = vunpack.c.l.b16 %v1139
        %v1176 = vunpack.c.l.b16 %v1140
        %v1177 = vpack.c.b16 %v1162, %v1161
        %v1178 = vpack.c.b16 %v1164, %v1163
        %v1179 = vpack.c.b16 %v1166, %v1165
        %v1180 = vpack.c.b16 %v1168, %v1167
        %v1181 = vpack.c.b16 %v1170, %v1169
        %v1182 = vpack.c.b16 %v1172, %v1171
        %v1183 = vpack.c.b16 %v1174, %v1173
        %v1184 = vpack.c.b16 %v1176, %v1175
        %1193 = vmatpush.bf16.msra.mxu0 %v1184
        %1194 = vmatpush.bf16.msra.mxu0 %v1183
        %1195 = vmatpush.bf16.msra.mxu0 %v1182
        %1196 = vmatpush.bf16.msra.mxu0 %v1181
        %1197 = vmatpush.bf16.msra.mxu0 %v1180
        %1198 = vmatpush.bf16.msra.mxu0 %v1179
        %1199 = vmatpush.bf16.msra.mxu0 %v1178
        %1200 = vmatpush.bf16.msra.mxu0 %v1177
        %1201 = vmatmul.bf16.gmra.mxu0 %v1000
        %v1202 = vpop.f32.mrf.mxu0
        %v1203 = vadd.f32 %v1143, %v1202
        %v1204 = vpop.f32.mrf.mxu0
        %v1205 = vadd.f32 %v1143, %v1204
        %1206 = vmatmul.bf16.gmra.mxu0 %v1001
        %v1207 = vpop.f32.mrf.mxu0
        %v1208 = vadd.f32 %v1143, %v1207
        %v1209 = vpop.f32.mrf.mxu0
        %v1210 = vadd.f32 %v1143, %v1209
        %1211 = vmatmul.bf16.gmra.mxu0 %v1002
        %v1212 = vpop.f32.mrf.mxu0
        %v1213 = vadd.f32 %v1143, %v1212
        %v1214 = vpop.f32.mrf.mxu0
        %v1215 = vadd.f32 %v1143, %v1214
        %1216 = vmatmul.bf16.gmra.mxu0 %v1003
        %v1217 = vpop.f32.mrf.mxu0
        %v1218 = vadd.f32 %v1143, %v1217
        %v1219 = vpop.f32.mrf.mxu0
        %v1220 = vadd.f32 %v1143, %v1219
        %1221 = vmatmul.bf16.gmra.mxu0 %v1004
        %v1222 = vpop.f32.mrf.mxu0
        %v1223 = vadd.f32 %v1143, %v1222
        %v1224 = vpop.f32.mrf.mxu0
        %v1225 = vadd.f32 %v1143, %v1224
        %1226 = vmatmul.bf16.gmra.mxu0 %v1005
        %v1227 = vpop.f32.mrf.mxu0
        %v1228 = vadd.f32 %v1143, %v1227
        %v1229 = vpop.f32.mrf.mxu0
        %v1230 = vadd.f32 %v1143, %v1229
        %1231 = vmatmul.bf16.gmra.mxu0 %v1006
        %v1232 = vpop.f32.mrf.mxu0
        %v1233 = vadd.f32 %v1143, %v1232
        %v1234 = vpop.f32.mrf.mxu0
        %v1235 = vadd.f32 %v1143, %v1234
        %1236 = vmatmul.bf16.gmra.mxu0 %v1007
        %v1237 = vpop.f32.mrf.mxu0
        %v1238 = vadd.f32 %v1143, %v1237
        %v1239 = vpop.f32.mrf.mxu0
        %v1240 = vadd.f32 %v1143, %v1239
        %1241 = vdwg.mxu0
        %v1242 = vmul.f32 %v1203, 1.442695
        %v1243 = vpow.pop %v1242
        %v1244 = vmul.f32 %v1205, 1.442695
        %v1245 = vpow.pop %v1244
        %v1246 = vmul.f32 %v1208, 1.442695
        %v1247 = vpow.pop %v1246
        %v1248 = vmul.f32 %v1210, 1.442695
        %v1249 = vpow.pop %v1248
        %v1250 = vmul.f32 %v1213, 1.442695
        %v1251 = vpow.pop %v1250
        %v1252 = vmul.f32 %v1215, 1.442695
        %v1253 = vpow.pop %v1252
        %v1254 = vmul.f32 %v1218, 1.442695
        %v1255 = vpow.pop %v1254
        %v1256 = vmul.f32 %v1220, 1.442695
        %v1257 = vpow.pop %v1256
        %v1258 = vmul.f32 %v1223, 1.442695
        %v1259 = vpow.pop %v1258
        %v1260 = vmul.f32 %v1225, 1.442695
        %v1261 = vpow.pop %v1260
        %v1262 = vmul.f32 %v1228, 1.442695
        %v1263 = vpow.pop %v1262
        %v1264 = vmul.f32 %v1230, 1.442695
        %v1265 = vpow.pop %v1264
        %v1266 = vmul.f32 %v1233, 1.442695
        %v1267 = vpow.pop %v1266
        %v1268 = vmul.f32 %v1235, 1.442695
        %v1269 = vpow.pop %v1268
        %v1270 = vmul.f32 %v1238, 1.442695
        %v1271 = vpow.pop %v1270
        %v1272 = vmul.f32 %v1240, 1.442695
        %v1273 = vpow.pop %v1272
        %v1274 = vld [vmem:[%s609] sm:$0xff]
        %v1275 = vld [vmem:[%s609 + $0x8] sm:$0xff]
        %v1276 = vld [vmem:[%s609 + $0x10] sm:$0xff]
        %v1277 = vld [vmem:[%s609 + $0x18] sm:$0xff]
        %v1278 = vld [vmem:[%s609 + $0x20] sm:$0xff]
        %v1279 = vld [vmem:[%s609 + $0x28] sm:$0xff]
        %v1280 = vld [vmem:[%s609 + $0x30] sm:$0xff]
        %v1281 = vld [vmem:[%s609 + $0x38] sm:$0xff]
        %v1282 = vld [vmem:[%s609 + $0x40] sm:$0xff]
        %v1283 = vld [vmem:[%s609 + $0x48] sm:$0xff]
        %v1284 = vld [vmem:[%s609 + $0x50] sm:$0xff]
        %v1285 = vld [vmem:[%s609 + $0x58] sm:$0xff]
        %v1286 = vld [vmem:[%s609 + $0x60] sm:$0xff]
        %v1287 = vld [vmem:[%s609 + $0x68] sm:$0xff]
        %v1288 = vld [vmem:[%s609 + $0x70] sm:$0xff]
        %v1289 = vld [vmem:[%s609 + $0x78] sm:$0xff]
        %v1290 = vmul.f32 %v1243, %v1274
        %v1291 = vmul.f32 %v1245, %v1275
        %v1292 = vmul.f32 %v1247, %v1276
        %v1293 = vmul.f32 %v1249, %v1277
        %v1294 = vmul.f32 %v1251, %v1278
        %v1295 = vmul.f32 %v1253, %v1279
        %v1296 = vmul.f32 %v1255, %v1280
        %v1297 = vmul.f32 %v1257, %v1281
        %v1298 = vmul.f32 %v1259, %v1282
        %v1299 = vmul.f32 %v1261, %v1283
        %v1300 = vmul.f32 %v1263, %v1284
        %v1301 = vmul.f32 %v1265, %v1285
        %v1302 = vmul.f32 %v1267, %v1286
        %v1303 = vmul.f32 %v1269, %v1287
        %v1304 = vmul.f32 %v1271, %v1288
        %v1305 = vmul.f32 %v1273, %v1289
        %v1306 = vadd.f32 %v1086, %v1290
        %v1307 = vadd.f32 %v1088, %v1291
        %v1308 = vadd.f32 %v1091, %v1292
        %v1309 = vadd.f32 %v1093, %v1293
        %v1310 = vadd.f32 %v1096, %v1294
        %v1311 = vadd.f32 %v1098, %v1295
        %v1312 = vadd.f32 %v1101, %v1296
        %v1313 = vadd.f32 %v1103, %v1297
        %v1314 = vadd.f32 %v1106, %v1298
        %v1315 = vadd.f32 %v1108, %v1299
        %v1316 = vadd.f32 %v1111, %v1300
        %v1317 = vadd.f32 %v1113, %v1301
        %v1318 = vadd.f32 %v1116, %v1302
        %v1319 = vadd.f32 %v1118, %v1303
        %v1320 = vadd.f32 %v1121, %v1304
        %v1321 = vadd.f32 %v1123, %v1305
        %v1322 = vpack.c.bf16 %v1307, %v1306
        %v1323 = vpack.c.bf16 %v1309, %v1308
        %v1324 = vpack.c.bf16 %v1311, %v1310
        %v1325 = vpack.c.bf16 %v1313, %v1312
        %v1326 = vpack.c.bf16 %v1315, %v1314
        %v1327 = vpack.c.bf16 %v1317, %v1316
        %v1328 = vpack.c.bf16 %v1319, %v1318
        %v1329 = vpack.c.bf16 %v1321, %v1320
        %v1330 = vld [vmem:[#allocation13] sm:$0xf]
        %v1331 = vld [vmem:[#allocation13 + $0x4] sm:$0xf]
        %v1332 = vld [vmem:[#allocation13 + $0x8] sm:$0xf]
        %v1333 = vld [vmem:[#allocation13 + $0xc] sm:$0xf]
        %v1334 = vld [vmem:[#allocation13 + $0x10] sm:$0xf]
        %v1335 = vld [vmem:[#allocation13 + $0x14] sm:$0xf]
        %v1336 = vld [vmem:[#allocation13 + $0x18] sm:$0xf]
        %v1337 = vld [vmem:[#allocation13 + $0x1c] sm:$0xf]
        %v1338 = vld [vmem:[#allocation13 + $0x20] sm:$0xf]
        %v1339 = vld [vmem:[#allocation13 + $0x24] sm:$0xf]
        %v1340 = vld [vmem:[#allocation13 + $0x28] sm:$0xf]
        %v1341 = vld [vmem:[#allocation13 + $0x2c] sm:$0xf]
        %v1342 = vld [vmem:[#allocation13 + $0x30] sm:$0xf]
        %v1343 = vld [vmem:[#allocation13 + $0x34] sm:$0xf]
        %v1344 = vld [vmem:[#allocation13 + $0x38] sm:$0xf]
        %v1345 = vld [vmem:[#allocation13 + $0x3c] sm:$0xf]
        %v1346 = vld [vmem:[%s11] sm:$0x1]
        %v1348 = vperm.slane %v1346, 0
        %v1366 = vunpack.c.l.b16 %v1330
        %v1367 = vunpack.c.l.b16 %v1331
        %v1368 = vunpack.c.l.b16 %v1332
        %v1369 = vunpack.c.l.b16 %v1333
        %v1370 = vunpack.c.l.b16 %v1334
        %v1371 = vunpack.c.l.b16 %v1335
        %v1372 = vunpack.c.l.b16 %v1336
        %v1373 = vunpack.c.l.b16 %v1337
        %v1374 = vunpack.c.l.b16 %v1338
        %v1375 = vunpack.c.l.b16 %v1339
        %v1376 = vunpack.c.l.b16 %v1340
        %v1377 = vunpack.c.l.b16 %v1341
        %v1378 = vunpack.c.l.b16 %v1342
        %v1379 = vunpack.c.l.b16 %v1343
        %v1380 = vunpack.c.l.b16 %v1344
        %v1381 = vunpack.c.l.b16 %v1345
        %v1382 = vpack.c.b16 %v1367, %v1366
        %v1383 = vpack.c.b16 %v1369, %v1368
        %v1384 = vpack.c.b16 %v1371, %v1370
        %v1385 = vpack.c.b16 %v1373, %v1372
        %v1386 = vpack.c.b16 %v1375, %v1374
        %v1387 = vpack.c.b16 %v1377, %v1376
        %v1388 = vpack.c.b16 %v1379, %v1378
        %v1389 = vpack.c.b16 %v1381, %v1380
        %1398 = vmatpush.bf16.msra.mxu0 %v1389
        %1399 = vmatpush.bf16.msra.mxu0 %v1388
        %1400 = vmatpush.bf16.msra.mxu0 %v1387
        %1401 = vmatpush.bf16.msra.mxu0 %v1386
        %1402 = vmatpush.bf16.msra.mxu0 %v1385
        %1403 = vmatpush.bf16.msra.mxu0 %v1384
        %1404 = vmatpush.bf16.msra.mxu0 %v1383
        %1405 = vmatpush.bf16.msra.mxu0 %v1382
        %1406 = vmatmul.bf16.gmra.mxu0 %v1322
        %v1407 = vpop.f32.mrf.mxu0
        %v1408 = vadd.f32 %v1348, %v1407
        %v1409 = vpop.f32.mrf.mxu0
        %v1410 = vadd.f32 %v1348, %v1409
        %1411 = vmatmul.bf16.gmra.mxu0 %v1323
        %v1412 = vpop.f32.mrf.mxu0
        %v1413 = vadd.f32 %v1348, %v1412
        %v1414 = vpop.f32.mrf.mxu0
        %v1415 = vadd.f32 %v1348, %v1414
        %1416 = vmatmul.bf16.gmra.mxu0 %v1324
        %v1417 = vpop.f32.mrf.mxu0
        %v1418 = vadd.f32 %v1348, %v1417
        %v1419 = vpop.f32.mrf.mxu0
        %v1420 = vadd.f32 %v1348, %v1419
        %1421 = vmatmul.bf16.gmra.mxu0 %v1325
        %v1422 = vpop.f32.mrf.mxu0
        %v1423 = vadd.f32 %v1348, %v1422
        %v1424 = vpop.f32.mrf.mxu0
        %v1425 = vadd.f32 %v1348, %v1424
        %1426 = vmatmul.bf16.gmra.mxu0 %v1326
        %v1427 = vpop.f32.mrf.mxu0
        %v1428 = vadd.f32 %v1348, %v1427
        %v1429 = vpop.f32.mrf.mxu0
        %v1430 = vadd.f32 %v1348, %v1429
        %1431 = vmatmul.bf16.gmra.mxu0 %v1327
        %v1432 = vpop.f32.mrf.mxu0
        %v1433 = vadd.f32 %v1348, %v1432
        %v1434 = vpop.f32.mrf.mxu0
        %v1435 = vadd.f32 %v1348, %v1434
        %1436 = vmatmul.bf16.gmra.mxu0 %v1328
        %v1437 = vpop.f32.mrf.mxu0
        %v1438 = vadd.f32 %v1348, %v1437
        %v1439 = vpop.f32.mrf.mxu0
        %v1440 = vadd.f32 %v1348, %v1439
        %1441 = vmatmul.bf16.gmra.mxu0 %v1329
        %v1442 = vpop.f32.mrf.mxu0
        %v1443 = vadd.f32 %v1348, %v1442
        %v1444 = vpop.f32.mrf.mxu0
        %v1445 = vadd.f32 %v1348, %v1444
        %1446 = vdwg.mxu0
        %v1447 = vmax.f32 %v1408, 0.0
        %v1448 = vmax.f32 %v1410, 0.0
        %v1449 = vmax.f32 %v1413, 0.0
        %v1450 = vmax.f32 %v1415, 0.0
        %v1451 = vmax.f32 %v1418, 0.0
        %v1452 = vmax.f32 %v1420, 0.0
        %v1453 = vmax.f32 %v1423, 0.0
        %v1454 = vmax.f32 %v1425, 0.0
        %v1455 = vmax.f32 %v1428, 0.0
        %v1456 = vmax.f32 %v1430, 0.0
        %v1457 = vmax.f32 %v1433, 0.0
        %v1458 = vmax.f32 %v1435, 0.0
        %v1459 = vmax.f32 %v1438, 0.0
        %v1460 = vmax.f32 %v1440, 0.0
        %v1461 = vmax.f32 %v1443, 0.0
        %v1462 = vmax.f32 %v1445, 0.0
        %v1463 = vpack.c.bf16 %v1448, %v1447
        %v1464 = vpack.c.bf16 %v1450, %v1449
        %v1465 = vpack.c.bf16 %v1452, %v1451
        %v1466 = vpack.c.bf16 %v1454, %v1453
        %v1467 = vpack.c.bf16 %v1456, %v1455
        %v1468 = vpack.c.bf16 %v1458, %v1457
        %v1469 = vpack.c.bf16 %v1460, %v1459
        %v1470 = vpack.c.bf16 %v1462, %v1461
        %v1471 = vld [vmem:[#allocation14] sm:$0xf]
        %v1472 = vld [vmem:[#allocation14 + $0x4] sm:$0xf]
        %v1473 = vld [vmem:[#allocation14 + $0x8] sm:$0xf]
        %v1474 = vld [vmem:[#allocation14 + $0xc] sm:$0xf]
        %v1475 = vld [vmem:[#allocation14 + $0x10] sm:$0xf]
        %v1476 = vld [vmem:[#allocation14 + $0x14] sm:$0xf]
        %v1477 = vld [vmem:[#allocation14 + $0x18] sm:$0xf]
        %v1478 = vld [vmem:[#allocation14 + $0x1c] sm:$0xf]
        %v1479 = vld [vmem:[#allocation14 + $0x20] sm:$0xf]
        %v1480 = vld [vmem:[#allocation14 + $0x24] sm:$0xf]
        %v1481 = vld [vmem:[#allocation14 + $0x28] sm:$0xf]
        %v1482 = vld [vmem:[#allocation14 + $0x2c] sm:$0xf]
        %v1483 = vld [vmem:[#allocation14 + $0x30] sm:$0xf]
        %v1484 = vld [vmem:[#allocation14 + $0x34] sm:$0xf]
        %v1485 = vld [vmem:[#allocation14 + $0x38] sm:$0xf]
        %v1486 = vld [vmem:[#allocation14 + $0x3c] sm:$0xf]
        %v1487 = vld [vmem:[%s13] sm:$0x1]
        %v1489 = vperm.slane %v1487, 0
        %v1507 = vunpack.c.l.b16 %v1471
        %v1508 = vunpack.c.l.b16 %v1472
        %v1509 = vunpack.c.l.b16 %v1473
        %v1510 = vunpack.c.l.b16 %v1474
        %v1511 = vunpack.c.l.b16 %v1475
        %v1512 = vunpack.c.l.b16 %v1476
        %v1513 = vunpack.c.l.b16 %v1477
        %v1514 = vunpack.c.l.b16 %v1478
        %v1515 = vunpack.c.l.b16 %v1479
        %v1516 = vunpack.c.l.b16 %v1480
        %v1517 = vunpack.c.l.b16 %v1481
        %v1518 = vunpack.c.l.b16 %v1482
        %v1519 = vunpack.c.l.b16 %v1483
        %v1520 = vunpack.c.l.b16 %v1484
        %v1521 = vunpack.c.l.b16 %v1485
        %v1522 = vunpack.c.l.b16 %v1486
        %v1523 = vpack.c.b16 %v1508, %v1507
        %v1524 = vpack.c.b16 %v1510, %v1509
        %v1525 = vpack.c.b16 %v1512, %v1511
        %v1526 = vpack.c.b16 %v1514, %v1513
        %v1527 = vpack.c.b16 %v1516, %v1515
        %v1528 = vpack.c.b16 %v1518, %v1517
        %v1529 = vpack.c.b16 %v1520, %v1519
        %v1530 = vpack.c.b16 %v1522, %v1521
        %1539 = vmatpush.bf16.msra.mxu0 %v1530
        %1540 = vmatpush.bf16.msra.mxu0 %v1529
        %1541 = vmatpush.bf16.msra.mxu0 %v1528
        %1542 = vmatpush.bf16.msra.mxu0 %v1527
        %1543 = vmatpush.bf16.msra.mxu0 %v1526
        %1544 = vmatpush.bf16.msra.mxu0 %v1525
        %1545 = vmatpush.bf16.msra.mxu0 %v1524
        %1546 = vmatpush.bf16.msra.mxu0 %v1523
        %1547 = vmatmul.bf16.gmra.mxu0 %v1463
        %v1548 = vpop.f32.mrf.mxu0
        %v1549 = vadd.f32 %v1489, %v1548
        %v1550 = vpop.f32.mrf.mxu0
        %v1551 = vadd.f32 %v1489, %v1550
        %1552 = vmatmul.bf16.gmra.mxu0 %v1464
        %v1553 = vpop.f32.mrf.mxu0
        %v1554 = vadd.f32 %v1489, %v1553
        %v1555 = vpop.f32.mrf.mxu0
        %v1556 = vadd.f32 %v1489, %v1555
        %1557 = vmatmul.bf16.gmra.mxu0 %v1465
        %v1558 = vpop.f32.mrf.mxu0
        %v1559 = vadd.f32 %v1489, %v1558
        %v1560 = vpop.f32.mrf.mxu0
        %v1561 = vadd.f32 %v1489, %v1560
        %1562 = vmatmul.bf16.gmra.mxu0 %v1466
        %v1563 = vpop.f32.mrf.mxu0
        %v1564 = vadd.f32 %v1489, %v1563
        %v1565 = vpop.f32.mrf.mxu0
        %v1566 = vadd.f32 %v1489, %v1565
        %1567 = vmatmul.bf16.gmra.mxu0 %v1467
        %v1568 = vpop.f32.mrf.mxu0
        %v1569 = vadd.f32 %v1489, %v1568
        %v1570 = vpop.f32.mrf.mxu0
        %v1571 = vadd.f32 %v1489, %v1570
        %1572 = vmatmul.bf16.gmra.mxu0 %v1468
        %v1573 = vpop.f32.mrf.mxu0
        %v1574 = vadd.f32 %v1489, %v1573
        %v1575 = vpop.f32.mrf.mxu0
        %v1576 = vadd.f32 %v1489, %v1575
        %1577 = vmatmul.bf16.gmra.mxu0 %v1469
        %v1578 = vpop.f32.mrf.mxu0
        %v1579 = vadd.f32 %v1489, %v1578
        %v1580 = vpop.f32.mrf.mxu0
        %v1581 = vadd.f32 %v1489, %v1580
        %1582 = vmatmul.bf16.gmra.mxu0 %v1470
        %v1583 = vpop.f32.mrf.mxu0
        %v1584 = vadd.f32 %v1489, %v1583
        %v1585 = vpop.f32.mrf.mxu0
        %v1586 = vadd.f32 %v1489, %v1585
        %1587 = vdwg.mxu0
        %v1588 = vmax.f32 %v1549, 0.0
        %v1589 = vmax.f32 %v1551, 0.0
        %v1590 = vmax.f32 %v1554, 0.0
        %v1591 = vmax.f32 %v1556, 0.0
        %v1592 = vmax.f32 %v1559, 0.0
        %v1593 = vmax.f32 %v1561, 0.0
        %v1594 = vmax.f32 %v1564, 0.0
        %v1595 = vmax.f32 %v1566, 0.0
        %v1596 = vmax.f32 %v1569, 0.0
        %v1597 = vmax.f32 %v1571, 0.0
        %v1598 = vmax.f32 %v1574, 0.0
        %v1599 = vmax.f32 %v1576, 0.0
        %v1600 = vmax.f32 %v1579, 0.0
        %v1601 = vmax.f32 %v1581, 0.0
        %v1602 = vmax.f32 %v1584, 0.0
        %v1603 = vmax.f32 %v1586, 0.0
        %v1604 = vpack.c.bf16 %v1589, %v1588
        %v1605 = vpack.c.bf16 %v1591, %v1590
        %v1606 = vpack.c.bf16 %v1593, %v1592
        %v1607 = vpack.c.bf16 %v1595, %v1594
        %v1608 = vpack.c.bf16 %v1597, %v1596
        %v1609 = vpack.c.bf16 %v1599, %v1598
        %v1610 = vpack.c.bf16 %v1601, %v1600
        %v1611 = vpack.c.bf16 %v1603, %v1602
        %v1612 = vld [vmem:[#allocation16] sm:$0xf]
        %v1613 = vld [vmem:[#allocation16 + $0x4] sm:$0xf]
        %v1614 = vld [vmem:[#allocation16 + $0x8] sm:$0xf]
        %v1615 = vld [vmem:[#allocation16 + $0xc] sm:$0xf]
        %v1616 = vld [vmem:[#allocation16 + $0x10] sm:$0xf]
        %v1617 = vld [vmem:[#allocation16 + $0x14] sm:$0xf]
        %v1618 = vld [vmem:[#allocation16 + $0x18] sm:$0xf]
        %v1619 = vld [vmem:[#allocation16 + $0x1c] sm:$0xf]
        %v1620 = vld [vmem:[#allocation16 + $0x20] sm:$0xf]
        %v1621 = vld [vmem:[#allocation16 + $0x24] sm:$0xf]
        %v1622 = vld [vmem:[#allocation16 + $0x28] sm:$0xf]
        %v1623 = vld [vmem:[#allocation16 + $0x2c] sm:$0xf]
        %v1624 = vld [vmem:[#allocation16 + $0x30] sm:$0xf]
        %v1625 = vld [vmem:[#allocation16 + $0x34] sm:$0xf]
        %v1626 = vld [vmem:[#allocation16 + $0x38] sm:$0xf]
        %v1627 = vld [vmem:[#allocation16 + $0x3c] sm:$0xf]
        %v1628 = vld [vmem:[%s15] sm:$0x1]
        %v1630 = vperm.slane %v1628, 0
        %v1648 = vunpack.c.l.b16 %v1612
        %v1649 = vunpack.c.l.b16 %v1613
        %v1650 = vunpack.c.l.b16 %v1614
        %v1651 = vunpack.c.l.b16 %v1615
        %v1652 = vunpack.c.l.b16 %v1616
        %v1653 = vunpack.c.l.b16 %v1617
        %v1654 = vunpack.c.l.b16 %v1618
        %v1655 = vunpack.c.l.b16 %v1619
        %v1656 = vunpack.c.l.b16 %v1620
        %v1657 = vunpack.c.l.b16 %v1621
        %v1658 = vunpack.c.l.b16 %v1622
        %v1659 = vunpack.c.l.b16 %v1623
        %v1660 = vunpack.c.l.b16 %v1624
        %v1661 = vunpack.c.l.b16 %v1625
        %v1662 = vunpack.c.l.b16 %v1626
        %v1663 = vunpack.c.l.b16 %v1627
        %v1664 = vpack.c.b16 %v1649, %v1648
        %v1665 = vpack.c.b16 %v1651, %v1650
        %v1666 = vpack.c.b16 %v1653, %v1652
        %v1667 = vpack.c.b16 %v1655, %v1654
        %v1668 = vpack.c.b16 %v1657, %v1656
        %v1669 = vpack.c.b16 %v1659, %v1658
        %v1670 = vpack.c.b16 %v1661, %v1660
        %v1671 = vpack.c.b16 %v1663, %v1662
        %1680 = vmatpush.bf16.msra.mxu0 %v1671
        %1681 = vmatpush.bf16.msra.mxu0 %v1670
        %1682 = vmatpush.bf16.msra.mxu0 %v1669
        %1683 = vmatpush.bf16.msra.mxu0 %v1668
        %1684 = vmatpush.bf16.msra.mxu0 %v1667
        %1685 = vmatpush.bf16.msra.mxu0 %v1666
        %1686 = vmatpush.bf16.msra.mxu0 %v1665
        %1687 = vmatpush.bf16.msra.mxu0 %v1664
        %1688 = vmatmul.bf16.gmra.mxu0 %v1604
        %v1689 = vpop.f32.mrf.mxu0
        %v1690 = vadd.f32 %v1630, %v1689
        %v1691 = vpop.f32.mrf.mxu0
        %v1692 = vadd.f32 %v1630, %v1691
        %1693 = vmatmul.bf16.gmra.mxu0 %v1605
        %v1694 = vpop.f32.mrf.mxu0
        %v1695 = vadd.f32 %v1630, %v1694
        %v1696 = vpop.f32.mrf.mxu0
        %v1697 = vadd.f32 %v1630, %v1696
        %1698 = vmatmul.bf16.gmra.mxu0 %v1606
        %v1699 = vpop.f32.mrf.mxu0
        %v1700 = vadd.f32 %v1630, %v1699
        %v1701 = vpop.f32.mrf.mxu0
        %v1702 = vadd.f32 %v1630, %v1701
        %1703 = vmatmul.bf16.gmra.mxu0 %v1607
        %v1704 = vpop.f32.mrf.mxu0
        %v1705 = vadd.f32 %v1630, %v1704
        %v1706 = vpop.f32.mrf.mxu0
        %v1707 = vadd.f32 %v1630, %v1706
        %1708 = vmatmul.bf16.gmra.mxu0 %v1608
        %v1709 = vpop.f32.mrf.mxu0
        %v1710 = vadd.f32 %v1630, %v1709
        %v1711 = vpop.f32.mrf.mxu0
        %v1712 = vadd.f32 %v1630, %v1711
        %1713 = vmatmul.bf16.gmra.mxu0 %v1609
        %v1714 = vpop.f32.mrf.mxu0
        %v1715 = vadd.f32 %v1630, %v1714
        %v1716 = vpop.f32.mrf.mxu0
        %v1717 = vadd.f32 %v1630, %v1716
        %1718 = vmatmul.bf16.gmra.mxu0 %v1610
        %v1719 = vpop.f32.mrf.mxu0
        %v1720 = vadd.f32 %v1630, %v1719
        %v1721 = vpop.f32.mrf.mxu0
        %v1722 = vadd.f32 %v1630, %v1721
        %1723 = vmatmul.bf16.gmra.mxu0 %v1611
        %v1724 = vpop.f32.mrf.mxu0
        %v1725 = vadd.f32 %v1630, %v1724
        %v1726 = vpop.f32.mrf.mxu0
        %v1727 = vadd.f32 %v1630, %v1726
        %1728 = vdwg.mxu0
        %1729 = vst [vmem:[%s698] sm:$0xff] %v1690
        %1730 = vst [vmem:[%s698 + $0x8] sm:$0xff] %v1692
        %1731 = vst [vmem:[%s698 + $0x10] sm:$0xff] %v1695
        %1732 = vst [vmem:[%s698 + $0x18] sm:$0xff] %v1697
        %1733 = vst [vmem:[%s698 + $0x20] sm:$0xff] %v1700
        %1734 = vst [vmem:[%s698 + $0x28] sm:$0xff] %v1702
        %1735 = vst [vmem:[%s698 + $0x30] sm:$0xff] %v1705
        %1736 = vst [vmem:[%s698 + $0x38] sm:$0xff] %v1707
        %1737 = vst [vmem:[%s698 + $0x40] sm:$0xff] %v1710
        %1738 = vst [vmem:[%s698 + $0x48] sm:$0xff] %v1712
        %1739 = vst [vmem:[%s698 + $0x50] sm:$0xff] %v1715
        %1740 = vst [vmem:[%s698 + $0x58] sm:$0xff] %v1717
        %1741 = vst [vmem:[%s698 + $0x60] sm:$0xff] %v1720
        %1742 = vst [vmem:[%s698 + $0x68] sm:$0xff] %v1722
        %1743 = vst [vmem:[%s698 + $0x70] sm:$0xff] %v1725
        %1744 = vst [vmem:[%s698 + $0x78] sm:$0xff] %v1727
        %s1745 = sand.u32 %s393, 1
        %s1746 = scalar_lea.sflag [#allocation4], %s1745
        %s1747 = sand.u32 %s393, 1
        %s1748 = smul.addr %s1747, 128
        %s1749 = scalar_lea.vmem [#allocation17], %s1748
        // Predicated region
        $region121: #{tpu_custom_call.1} parent=83 // pred_check
          %p1750 = pneg %p403
        $region122: #{tpu_custom_call.1} parent=83 // pred_check_branch
          %1752 = sbr.rel (%p1750) target = $region124
        $region123: #{tpu_custom_call.1} parent=83 // pred_region
          %s1753 = smul.u32 16, %s39
          %1755 = vsyncadd %s1746, 0
          %s1756 = smul.addr %s1753, 8
          %s1757 = scalar_lea.hbm %s16, %s1756
          %s1758 = sshll.u32 %s1749, 4
          %s1759 = int_to_ptr.vmem [resolvable:$true] %s1758
          %s1760 = sshll.u32 %s1757, 4
          %s1761 = int_to_ptr.hbm [resolvable:$true] %s1760
          %1766 = dma.vmem_to_hbm [thread:$0]  %s1759, 2048, %s1761, %s1746, 128, 128, 8
        $region124: #{tpu_custom_call.1} parent=83 // pred_fallthru
          _
      $region84: #{tpu_custom_call.1} parent=5 // pred_fallthru
        _
      %p1767 = scmp.le.s32.totalorder 2, %s34
      // Predicated region
      $region125: #{tpu_custom_call.1} parent=5 // pred_check
        %p1768 = pneg %p1767
      $region126: #{tpu_custom_call.1} parent=5 // pred_check_branch
        %1770 = sbr.rel (%p1768) target = $region128
      $region127: #{tpu_custom_call.1} parent=5 // pred_region
        %s1771 = ssub.s32 %s34, 2
        // Predicated region
        $region129: #{tpu_custom_call.1} parent=127 // pred_check
          %p1772 = pneg %p409
        $region130: #{tpu_custom_call.1} parent=127 // pred_check_branch
          %1774 = sbr.rel (%p1772) target = $region132
        $region131: #{tpu_custom_call.1} parent=127 // pred_region
          %s1775 = sand.u32 %s394, 1
          %s1776 = scalar_lea.sflag [#allocation4], %s1775
          %s1777 = sand.u32 %s394, 1
          %s1778 = smul.addr %s1777, 128
          %s1779 = scalar_lea.vmem [#allocation17], %s1778
          %1781 = dma.done %s1776, 2048
        $region132: #{tpu_custom_call.1} parent=127 // pred_fallthru
          _
      $region128: #{tpu_custom_call.1} parent=5 // pred_fallthru
        _
    $region6: #{tpu_custom_call.1} parent=1 // loop_footer
      %s38 = sadd.s32 1, %s34
    $region7: #{tpu_custom_call.1} parent=1 // loop_footer_branch
      %33 = sbr.rel target = $region3
    $region8: #{tpu_custom_call.1} parent=1 // loop_exit
      _
    %1782 = vsyncpa [#allocation3], 1
    %s1783 = scalar_lea.sflag [#allocation3], 1
    %1784 = vsyncpa %s1783, 1
    %1785 = vsyncpa [#allocation6], 1
    %s1786 = scalar_lea.sflag [#allocation6], 1
    %1787 = vsyncpa %s1786, 1
    %1788 = vsyncpa [#allocation9], 1
    %1789 = vsyncpa [#allocation12], 1
    %1790 = vsyncpa [#allocation15], 1
    %1791 = vsyncpa [#allocation4], 1
    %s1792 = scalar_lea.sflag [#allocation4], 1
    %1793 = vsyncpa %s1792, 1

</llo_original>
